<compile_context>
chip_gen: v6e
topology: v6e:2x2x1
jax: 0.10.0
libtpu: 0.0.40
codegen_flags: <defaults>
</compile_context>

<pallas_src>
import functools

import jax
import jax.numpy as jnp
from jax.experimental import pallas as pl
from jax.experimental.pallas import tpu as pltpu


def _round_up(v, m):
    return (v + m - 1) // m * m


def _fused_conv_kernel(x_ref, w_ref, b_ref, scale_ref, shift_ref, out_ref, *,
                       row_offsets, m_rows, n_pool, b_tile, img_stride):
    """Fused conv(+bias) -> 2x2 maxpool -> ReLU -> BN(eval) for B_tile images.

    x_ref:     (b_tile * n_pool * r, Cin) bf16  phase-decomposed, flattened input block
    w_ref:     (KH*KW, Cin, Cout)        f32   conv weights, one (Cin, Cout) slab per tap
    b_ref:     (1, Cout) f32  conv bias
    scale_ref: (1, Cout) f32  gamma / sqrt(running_var + eps)
    shift_ref: (1, Cout) f32  beta - running_mean * scale
    out_ref:   (b_tile * m_rows, Cout) f32  pooled output rows; per image, row = op*w2p + oq
               (columns oq >= Wp are garbage, cropped by the wrapper)

    row_offsets[t][o] (static): row offset into one image's block of the (m_rows, Cin) slice
    used by conv tap t and pooling-window offset o.  img_stride = n_pool * r.
    """
    # Single bf16 -> f32 upcast of the whole block (HBM stream is bf16; the old
    # per-tap casts are gone).
    x = x_ref[...].astype(jnp.float32)

    # Conv as a sum over the KH*KW taps of shifted matmuls (in-kernel "im2col").
    # The n_pool pooling offsets and the b_tile images are stacked along the LHS
    # rows so each tap is a single MXU matmul with f32 accumulation.
    acc = None
    for t, offs in enumerate(row_offsets):
        pieces = []
        for b in range(b_tile):
            base = b * img_stride
            for off in offs:
                pieces.append(x[base + off:base + off + m_rows, :])
        lhs = pieces[0] if len(pieces) == 1 else jnp.concatenate(pieces, axis=0)
        contrib = jnp.dot(lhs, w_ref[t], preferred_element_type=jnp.float32)
        acc = contrib if acc is None else acc + contrib

    bias = b_ref[...]
    scale = scale_ref[...]
    shift = shift_ref[...]

    # acc rows are laid out [image][pool_offset][m_rows]; m_rows % 8 == 0, so every
    # slice boundary below is sublane-aligned.
    for b in range(b_tile):
        y = acc[b * n_pool * m_rows:(b * n_pool + 1) * m_rows]
        for o in range(1, n_pool):
            s0 = (b * n_pool + o) * m_rows
            y = jnp.maximum(y, acc[s0:s0 + m_rows])
        # Bias once after the max (max(d_o) + b == max(d_o + b)), ReLU,
        # BatchNorm(eval) affine; Dropout(eval) = identity.
        y = jnp.maximum(y + bias, 0.0)
        y = y * scale + shift
        out_ref[b * m_rows:(b + 1) * m_rows, :] = y.astype(out_ref.dtype)


@functools.partial(jax.jit, static_argnames=("pool", "eps"))
def basic_conv2d(x_nchw, conv_w, conv_b, bn_gamma, bn_beta, bn_mean, bn_var,
                 *, pool=True, eps=1e-3):
    """x_nchw: (N, Cin, H, W) f32; conv_w: (Cout, Cin, KH, KW). Returns NCHW f32."""
    n, cin, h, w = x_nchw.shape
    cout, _, kh, kw = conv_w.shape
    s = 2 if pool else 1

    ho, wo = h - kh + 1, w - kw + 1              # stride-1 VALID conv output
    hp, wp = ho // s, wo // s                    # after optional 2x2 max pool
    h2 = -(-h // s)                              # per-phase spatial dims (ceil)
    w2 = -(-w // s)
    w2p = _round_up(w2, 8)                       # sublane-aligned flattened phase width
    m_rows = hp * w2p                            # flattened output rows per image (% 8 == 0)
    q_max_i = (s - 1 + kh - 1) // s
    q_max_j = (s - 1 + kw - 1) // s
    r = _round_up(max(m_rows + q_max_i * w2p + q_max_j, h2 * w2p), 8)
    n_pool = s * s
    img_stride = n_pool * r

    # Batch tile: amortize per-grid-step overhead, keep >= 2 grid units for v7x megacore.
    b_tile = max(1, min(8, n // 2)) if n >= 2 else 1
    g = -(-n // b_tile)
    n_pad = g * b_tile

    # ---- XLA prep (bf16, half-width copy): phase-decompose + flatten ----
    x_nhwc = jnp.transpose(x_nchw.astype(jnp.bfloat16), (0, 2, 3, 1))
    phase_blocks = []
    for ri in range(s):
        for rj in range(s):
            ph = x_nhwc[:, ri::s, rj::s, :]
            ph = jnp.pad(ph, ((0, 0), (0, h2 - ph.shape[1]),
                              (0, w2p - ph.shape[2]), (0, 0)))
            ph = ph.reshape(n, h2 * w2p, cin)
            ph = jnp.pad(ph, ((0, 0), (0, r - h2 * w2p), (0, 0)))
            phase_blocks.append(ph)
    x_prep = jnp.concatenate(phase_blocks, axis=1)            # (N, n_pool*r, Cin) bf16
    if n_pad != n:
        x_prep = jnp.pad(x_prep, ((0, n_pad - n), (0, 0), (0, 0)))
    x_prep = x_prep.reshape(g, b_tile * img_stride, cin)      # group B_tile images per block

    # Static row-offset table: row_offsets[t][o] for conv tap t=(i,j), pool offset o=(a0,b0).
    row_offsets = []
    for i in range(kh):
        for j in range(kw):
            offs = []
            for a0 in range(s):
                for b0 in range(s):
                    u, v = a0 + i, b0 + j
                    phase_idx = (u % s) * s + (v % s)
                    offs.append(phase_idx * r + (u // s) * w2p + (v // s))
            row_offsets.append(tuple(offs))
    row_offsets = tuple(row_offsets)

    # Weights: one (Cin, Cout) slab per tap; BN folded into scale/shift (f32 epilogue).
    w_taps = jnp.transpose(conv_w, (2, 3, 1, 0)).reshape(kh * kw, cin, cout)
    w_taps = w_taps.astype(jnp.float32)
    bias = conv_b.reshape(1, cout).astype(jnp.float32)
    inv_std = 1.0 / jnp.sqrt(bn_var.astype(jnp.float32) + eps)
    scale = (bn_gamma * inv_std).reshape(1, cout).astype(jnp.float32)
    shift = (bn_beta - bn_mean * bn_gamma * inv_std).reshape(1, cout).astype(jnp.float32)

    # Explicit VMEM budget (double-buffered bf16 input, f32 in-kernel copy/acc, f32 output).
    x_block = b_tile * img_stride * cin
    acc_rows = b_tile * n_pool * m_rows
    est = (2 * x_block * 2 + x_block * 4
           + 3 * acc_rows * cout * 4
           + 2 * b_tile * m_rows * cout * 4
           + 2 * kh * kw * cin * cout * 4)
    vmem_limit = int(min(48 * 1024 * 1024, max(16 * 1024 * 1024, 2 * est)))

    kernel = functools.partial(_fused_conv_kernel, row_offsets=row_offsets,
                               m_rows=m_rows, n_pool=n_pool, b_tile=b_tile,
                               img_stride=img_stride)
    out_flat = pl.pallas_call(
        kernel,
        out_shape=jax.ShapeDtypeStruct((g, b_tile * m_rows, cout), jnp.float32),
        grid=(g,),
        in_specs=[
            pl.BlockSpec((None, b_tile * img_stride, cin), lambda gi: (gi, 0, 0)),
            pl.BlockSpec((kh * kw, cin, cout), lambda gi: (0, 0, 0)),
            pl.BlockSpec((1, cout), lambda gi: (0, 0)),
            pl.BlockSpec((1, cout), lambda gi: (0, 0)),
            pl.BlockSpec((1, cout), lambda gi: (0, 0)),
        ],
        out_specs=pl.BlockSpec((None, b_tile * m_rows, cout), lambda gi: (gi, 0, 0)),
        compiler_params=pltpu.CompilerParams(
            dimension_semantics=("parallel",),
            vmem_limit_bytes=vmem_limit),
    )(x_prep, w_taps, bias, scale, shift)

    # Crop garbage columns (oq >= wp), drop batch padding, restore NCHW (small pooled tensor).
    out_nhwc = out_flat.reshape(n_pad, hp, w2p, cout)[:n, :, :wp, :]
    return jnp.transpose(out_nhwc, (0, 3, 1, 2))


def _reference(x_nchw, conv_w, conv_b, gamma, beta, mean, var, pool, eps=1e-3):
    """Pure-JAX reference mirroring the PyTorch forward (eval-mode BN / dropout)."""
    y = jax.lax.conv_general_dilated(
        x_nchw, conv_w, window_strides=(1, 1), padding="VALID",
        dimension_numbers=("NCHW", "OIHW", "NCHW"))
    y = y + conv_b[None, :, None, None]
    if pool:
        y = jax.lax.reduce_window(y, -jnp.inf, jax.lax.max,
                                  (1, 1, 2, 2), (1, 1, 2, 2), "VALID")
    y = jnp.maximum(y, 0.0)
    scale = gamma / jnp.sqrt(var + eps)
    y = (y - mean[None, :, None, None]) * scale[None, :, None, None] \
        + beta[None, :, None, None]
    return y


if __name__ == "__main__":
    key = jax.random.PRNGKey(0)
    k_x, k_w, k_b, k_g, k_be, k_m, k_v = jax.random.split(key, 7)

    N, CIN, H, W = 2, 4, 16, 16
    COUT, KH, KW = 8, 3, 3

    x = jax.random.normal(k_x, (N, CIN, H, W), dtype=jnp.float32)
    conv_w = jax.random.normal(k_w, (COUT, CIN, KH, KW), dtype=jnp.float32) * 0.1
    conv_b = jax.random.normal(k_b, (COUT,), dtype=jnp.float32) * 0.1
    bn_gamma = 1.0 + 0.1 * jax.random.normal(k_g, (COUT,), dtype=jnp.float32)
    bn_beta = 0.1 * jax.random.normal(k_be, (COUT,), dtype=jnp.float32)
    bn_mean = 0.1 * jax.random.normal(k_m, (COUT,), dtype=jnp.float32)
    bn_var = jnp.abs(jax.random.normal(k_v, (COUT,), dtype=jnp.float32)) + 0.5

    # The kernel stores the prepped input in bf16, so compare against a reference with the
    # input pre-rounded to bf16; tolerance also covers possible bf16 MXU passes on the weights.
    x_bf = x.astype(jnp.bfloat16).astype(jnp.float32)

    for POOL in (True, False):
        out = basic_conv2d(x, conv_w, conv_b, bn_gamma, bn_beta, bn_mean, bn_var,
                           pool=POOL)
        out = jax.block_until_ready(out)
        ref = _reference(x_bf, conv_w, conv_b, bn_gamma, bn_beta, bn_mean, bn_var, POOL)
        assert out.shape == ref.shape, (POOL, out.shape, ref.shape)
        err = float(jnp.max(jnp.abs(out - ref)))
        assert jnp.allclose(out, ref, rtol=2e-2, atol=2e-2), (POOL, err)

    print("KERNEL_OK")
</pallas_src>

<mosaic_0001>
module attributes {stable_mosaic.version = 11 : i64} {
  func.func @_fused_conv_kernel(%arg0: i32, %arg1: memref<1x288x4xbf16, #tpu.memory_space<vmem>>, %arg2: memref<9x4x8xf32, #tpu.memory_space<vmem>>, %arg3: memref<1x8xf32, #tpu.memory_space<vmem>>, %arg4: memref<1x8xf32, #tpu.memory_space<vmem>>, %arg5: memref<1x8xf32, #tpu.memory_space<vmem>>, %arg6: memref<1x56x8xf32, #tpu.memory_space<vmem>>) attributes {dimension_semantics = [#tpu.dimension_semantics<parallel>], iteration_bounds = array<i64: 2>, scalar_prefetch = 0 : i64, scratch_operands = 0 : i64, tpu.core_type = #tpu.core_type<tc>, window_params = [{transform_indices = @transform_0, window_bounds = array<i64: 1, 288, 4>}, {pipeline_mode = #tpu.pipeline_mode<synchronous>, transform_indices = @transform_1, window_bounds = array<i64: 9, 4, 8>}, {pipeline_mode = #tpu.pipeline_mode<synchronous>, transform_indices = @transform_2, window_bounds = array<i64: 1, 8>}, {pipeline_mode = #tpu.pipeline_mode<synchronous>, transform_indices = @transform_3, window_bounds = array<i64: 1, 8>}, {pipeline_mode = #tpu.pipeline_mode<synchronous>, transform_indices = @transform_4, window_bounds = array<i64: 1, 8>}, {transform_indices = @transform_5, window_bounds = array<i64: 1, 56, 8>}]} {
    %c0 = arith.constant 0 : index
    %c0_0 = arith.constant 0 : index
    %c0_1 = arith.constant 0 : index
    %0 = vector.load %arg1[%c0, %c0_0, %c0_1] : memref<1x288x4xbf16, #tpu.memory_space<vmem>>, vector<1x288x4xbf16>
    %1 = vector.shape_cast %0 : vector<1x288x4xbf16> to vector<288x4xbf16>
    %2 = arith.extf %1 : vector<288x4xbf16> to vector<288x4xf32>
    %3 = vector.extract_strided_slice %2 {offsets = [0, 0], sizes = [56, 4], strides = [1, 1]} : vector<288x4xf32> to vector<56x4xf32>
    %4 = vector.extract_strided_slice %2 {offsets = [72, 0], sizes = [56, 4], strides = [1, 1]} : vector<288x4xf32> to vector<56x4xf32>
    %5 = vector.extract_strided_slice %2 {offsets = [144, 0], sizes = [56, 4], strides = [1, 1]} : vector<288x4xf32> to vector<56x4xf32>
    %6 = vector.extract_strided_slice %2 {offsets = [216, 0], sizes = [56, 4], strides = [1, 1]} : vector<288x4xf32> to vector<56x4xf32>
    %7 = tpu.concatenate %3, %4, %5, %6 in 0 : vector<56x4xf32>, vector<56x4xf32>, vector<56x4xf32>, vector<56x4xf32> -> vector<224x4xf32>
    %c0_2 = arith.constant 0 : index
    %c0_3 = arith.constant 0 : index
    %c0_4 = arith.constant 0 : index
    %8 = vector.load %arg2[%c0_2, %c0_3, %c0_4] : memref<9x4x8xf32, #tpu.memory_space<vmem>>, vector<1x4x8xf32>
    %9 = vector.shape_cast %8 : vector<1x4x8xf32> to vector<4x8xf32>
    %cst = arith.constant dense<0.000000e+00> : vector<224x8xf32>
    %10 = tpu.matmul %7, %9, %cst {dimension_numbers = #tpu.dot_dimension_numbers<[1], [0], [0], [1], [0, 0, 1, 1], [], []>} : vector<224x4xf32>, vector<4x8xf32>, vector<224x8xf32> -> vector<224x8xf32>
    %11 = vector.extract_strided_slice %2 {offsets = [72, 0], sizes = [56, 4], strides = [1, 1]} : vector<288x4xf32> to vector<56x4xf32>
    %12 = vector.extract_strided_slice %2 {offsets = [1, 0], sizes = [56, 4], strides = [1, 1]} : vector<288x4xf32> to vector<56x4xf32>
    %13 = vector.extract_strided_slice %2 {offsets = [216, 0], sizes = [56, 4], strides = [1, 1]} : vector<288x4xf32> to vector<56x4xf32>
    %14 = vector.extract_strided_slice %2 {offsets = [145, 0], sizes = [56, 4], strides = [1, 1]} : vector<288x4xf32> to vector<56x4xf32>
    %15 = tpu.concatenate %11, %12, %13, %14 in 0 : vector<56x4xf32>, vector<56x4xf32>, vector<56x4xf32>, vector<56x4xf32> -> vector<224x4xf32>
    %c1 = arith.constant 1 : index
    %c0_5 = arith.constant 0 : index
    %c0_6 = arith.constant 0 : index
    %16 = vector.load %arg2[%c1, %c0_5, %c0_6] : memref<9x4x8xf32, #tpu.memory_space<vmem>>, vector<1x4x8xf32>
    %17 = vector.shape_cast %16 : vector<1x4x8xf32> to vector<4x8xf32>
    %cst_7 = arith.constant dense<0.000000e+00> : vector<224x8xf32>
    %18 = tpu.matmul %15, %17, %cst_7 {dimension_numbers = #tpu.dot_dimension_numbers<[1], [0], [0], [1], [0, 0, 1, 1], [], []>} : vector<224x4xf32>, vector<4x8xf32>, vector<224x8xf32> -> vector<224x8xf32>
    %19 = arith.addf %10, %18 : vector<224x8xf32>
    %20 = vector.extract_strided_slice %2 {offsets = [1, 0], sizes = [56, 4], strides = [1, 1]} : vector<288x4xf32> to vector<56x4xf32>
    %21 = vector.extract_strided_slice %2 {offsets = [73, 0], sizes = [56, 4], strides = [1, 1]} : vector<288x4xf32> to vector<56x4xf32>
    %22 = vector.extract_strided_slice %2 {offsets = [145, 0], sizes = [56, 4], strides = [1, 1]} : vector<288x4xf32> to vector<56x4xf32>
    %23 = vector.extract_strided_slice %2 {offsets = [217, 0], sizes = [56, 4], strides = [1, 1]} : vector<288x4xf32> to vector<56x4xf32>
    %24 = tpu.concatenate %20, %21, %22, %23 in 0 : vector<56x4xf32>, vector<56x4xf32>, vector<56x4xf32>, vector<56x4xf32> -> vector<224x4xf32>
    %c2 = arith.constant 2 : index
    %c0_8 = arith.constant 0 : index
    %c0_9 = arith.constant 0 : index
    %25 = vector.load %arg2[%c2, %c0_8, %c0_9] : memref<9x4x8xf32, #tpu.memory_space<vmem>>, vector<1x4x8xf32>
    %26 = vector.shape_cast %25 : vector<1x4x8xf32> to vector<4x8xf32>
    %cst_10 = arith.constant dense<0.000000e+00> : vector<224x8xf32>
    %27 = tpu.matmul %24, %26, %cst_10 {dimension_numbers = #tpu.dot_dimension_numbers<[1], [0], [0], [1], [0, 0, 1, 1], [], []>} : vector<224x4xf32>, vector<4x8xf32>, vector<224x8xf32> -> vector<224x8xf32>
    %28 = arith.addf %19, %27 : vector<224x8xf32>
    %29 = vector.extract_strided_slice %2 {offsets = [144, 0], sizes = [56, 4], strides = [1, 1]} : vector<288x4xf32> to vector<56x4xf32>
    %30 = vector.extract_strided_slice %2 {offsets = [216, 0], sizes = [56, 4], strides = [1, 1]} : vector<288x4xf32> to vector<56x4xf32>
    %31 = vector.extract_strided_slice %2 {offsets = [8, 0], sizes = [56, 4], strides = [1, 1]} : vector<288x4xf32> to vector<56x4xf32>
    %32 = vector.extract_strided_slice %2 {offsets = [80, 0], sizes = [56, 4], strides = [1, 1]} : vector<288x4xf32> to vector<56x4xf32>
    %33 = tpu.concatenate %29, %30, %31, %32 in 0 : vector<56x4xf32>, vector<56x4xf32>, vector<56x4xf32>, vector<56x4xf32> -> vector<224x4xf32>
    %c3 = arith.constant 3 : index
    %c0_11 = arith.constant 0 : index
    %c0_12 = arith.constant 0 : index
    %34 = vector.load %arg2[%c3, %c0_11, %c0_12] : memref<9x4x8xf32, #tpu.memory_space<vmem>>, vector<1x4x8xf32>
    %35 = vector.shape_cast %34 : vector<1x4x8xf32> to vector<4x8xf32>
    %cst_13 = arith.constant dense<0.000000e+00> : vector<224x8xf32>
    %36 = tpu.matmul %33, %35, %cst_13 {dimension_numbers = #tpu.dot_dimension_numbers<[1], [0], [0], [1], [0, 0, 1, 1], [], []>} : vector<224x4xf32>, vector<4x8xf32>, vector<224x8xf32> -> vector<224x8xf32>
    %37 = arith.addf %28, %36 : vector<224x8xf32>
    %38 = vector.extract_strided_slice %2 {offsets = [216, 0], sizes = [56, 4], strides = [1, 1]} : vector<288x4xf32> to vector<56x4xf32>
    %39 = vector.extract_strided_slice %2 {offsets = [145, 0], sizes = [56, 4], strides = [1, 1]} : vector<288x4xf32> to vector<56x4xf32>
    %40 = vector.extract_strided_slice %2 {offsets = [80, 0], sizes = [56, 4], strides = [1, 1]} : vector<288x4xf32> to vector<56x4xf32>
    %41 = vector.extract_strided_slice %2 {offsets = [9, 0], sizes = [56, 4], strides = [1, 1]} : vector<288x4xf32> to vector<56x4xf32>
    %42 = tpu.concatenate %38, %39, %40, %41 in 0 : vector<56x4xf32>, vector<56x4xf32>, vector<56x4xf32>, vector<56x4xf32> -> vector<224x4xf32>
    %c4 = arith.constant 4 : index
    %c0_14 = arith.constant 0 : index
    %c0_15 = arith.constant 0 : index
    %43 = vector.load %arg2[%c4, %c0_14, %c0_15] : memref<9x4x8xf32, #tpu.memory_space<vmem>>, vector<1x4x8xf32>
    %44 = vector.shape_cast %43 : vector<1x4x8xf32> to vector<4x8xf32>
    %cst_16 = arith.constant dense<0.000000e+00> : vector<224x8xf32>
    %45 = tpu.matmul %42, %44, %cst_16 {dimension_numbers = #tpu.dot_dimension_numbers<[1], [0], [0], [1], [0, 0, 1, 1], [], []>} : vector<224x4xf32>, vector<4x8xf32>, vector<224x8xf32> -> vector<224x8xf32>
    %46 = arith.addf %37, %45 : vector<224x8xf32>
    %47 = vector.extract_strided_slice %2 {offsets = [145, 0], sizes = [56, 4], strides = [1, 1]} : vector<288x4xf32> to vector<56x4xf32>
    %48 = vector.extract_strided_slice %2 {offsets = [217, 0], sizes = [56, 4], strides = [1, 1]} : vector<288x4xf32> to vector<56x4xf32>
    %49 = vector.extract_strided_slice %2 {offsets = [9, 0], sizes = [56, 4], strides = [1, 1]} : vector<288x4xf32> to vector<56x4xf32>
    %50 = vector.extract_strided_slice %2 {offsets = [81, 0], sizes = [56, 4], strides = [1, 1]} : vector<288x4xf32> to vector<56x4xf32>
    %51 = tpu.concatenate %47, %48, %49, %50 in 0 : vector<56x4xf32>, vector<56x4xf32>, vector<56x4xf32>, vector<56x4xf32> -> vector<224x4xf32>
    %c5 = arith.constant 5 : index
    %c0_17 = arith.constant 0 : index
    %c0_18 = arith.constant 0 : index
    %52 = vector.load %arg2[%c5, %c0_17, %c0_18] : memref<9x4x8xf32, #tpu.memory_space<vmem>>, vector<1x4x8xf32>
    %53 = vector.shape_cast %52 : vector<1x4x8xf32> to vector<4x8xf32>
    %cst_19 = arith.constant dense<0.000000e+00> : vector<224x8xf32>
    %54 = tpu.matmul %51, %53, %cst_19 {dimension_numbers = #tpu.dot_dimension_numbers<[1], [0], [0], [1], [0, 0, 1, 1], [], []>} : vector<224x4xf32>, vector<4x8xf32>, vector<224x8xf32> -> vector<224x8xf32>
    %55 = arith.addf %46, %54 : vector<224x8xf32>
    %56 = vector.extract_strided_slice %2 {offsets = [8, 0], sizes = [56, 4], strides = [1, 1]} : vector<288x4xf32> to vector<56x4xf32>
    %57 = vector.extract_strided_slice %2 {offsets = [80, 0], sizes = [56, 4], strides = [1, 1]} : vector<288x4xf32> to vector<56x4xf32>
    %58 = vector.extract_strided_slice %2 {offsets = [152, 0], sizes = [56, 4], strides = [1, 1]} : vector<288x4xf32> to vector<56x4xf32>
    %59 = vector.extract_strided_slice %2 {offsets = [224, 0], sizes = [56, 4], strides = [1, 1]} : vector<288x4xf32> to vector<56x4xf32>
    %60 = tpu.concatenate %56, %57, %58, %59 in 0 : vector<56x4xf32>, vector<56x4xf32>, vector<56x4xf32>, vector<56x4xf32> -> vector<224x4xf32>
    %c6 = arith.constant 6 : index
    %c0_20 = arith.constant 0 : index
    %c0_21 = arith.constant 0 : index
    %61 = vector.load %arg2[%c6, %c0_20, %c0_21] : memref<9x4x8xf32, #tpu.memory_space<vmem>>, vector<1x4x8xf32>
    %62 = vector.shape_cast %61 : vector<1x4x8xf32> to vector<4x8xf32>
    %cst_22 = arith.constant dense<0.000000e+00> : vector<224x8xf32>
    %63 = tpu.matmul %60, %62, %cst_22 {dimension_numbers = #tpu.dot_dimension_numbers<[1], [0], [0], [1], [0, 0, 1, 1], [], []>} : vector<224x4xf32>, vector<4x8xf32>, vector<224x8xf32> -> vector<224x8xf32>
    %64 = arith.addf %55, %63 : vector<224x8xf32>
    %65 = vector.extract_strided_slice %2 {offsets = [80, 0], sizes = [56, 4], strides = [1, 1]} : vector<288x4xf32> to vector<56x4xf32>
    %66 = vector.extract_strided_slice %2 {offsets = [9, 0], sizes = [56, 4], strides = [1, 1]} : vector<288x4xf32> to vector<56x4xf32>
    %67 = vector.extract_strided_slice %2 {offsets = [224, 0], sizes = [56, 4], strides = [1, 1]} : vector<288x4xf32> to vector<56x4xf32>
    %68 = vector.extract_strided_slice %2 {offsets = [153, 0], sizes = [56, 4], strides = [1, 1]} : vector<288x4xf32> to vector<56x4xf32>
    %69 = tpu.concatenate %65, %66, %67, %68 in 0 : vector<56x4xf32>, vector<56x4xf32>, vector<56x4xf32>, vector<56x4xf32> -> vector<224x4xf32>
    %c7 = arith.constant 7 : index
    %c0_23 = arith.constant 0 : index
    %c0_24 = arith.constant 0 : index
    %70 = vector.load %arg2[%c7, %c0_23, %c0_24] : memref<9x4x8xf32, #tpu.memory_space<vmem>>, vector<1x4x8xf32>
    %71 = vector.shape_cast %70 : vector<1x4x8xf32> to vector<4x8xf32>
    %cst_25 = arith.constant dense<0.000000e+00> : vector<224x8xf32>
    %72 = tpu.matmul %69, %71, %cst_25 {dimension_numbers = #tpu.dot_dimension_numbers<[1], [0], [0], [1], [0, 0, 1, 1], [], []>} : vector<224x4xf32>, vector<4x8xf32>, vector<224x8xf32> -> vector<224x8xf32>
    %73 = arith.addf %64, %72 : vector<224x8xf32>
    %74 = vector.extract_strided_slice %2 {offsets = [9, 0], sizes = [56, 4], strides = [1, 1]} : vector<288x4xf32> to vector<56x4xf32>
    %75 = vector.extract_strided_slice %2 {offsets = [81, 0], sizes = [56, 4], strides = [1, 1]} : vector<288x4xf32> to vector<56x4xf32>
    %76 = vector.extract_strided_slice %2 {offsets = [153, 0], sizes = [56, 4], strides = [1, 1]} : vector<288x4xf32> to vector<56x4xf32>
    %77 = vector.extract_strided_slice %2 {offsets = [225, 0], sizes = [56, 4], strides = [1, 1]} : vector<288x4xf32> to vector<56x4xf32>
    %78 = tpu.concatenate %74, %75, %76, %77 in 0 : vector<56x4xf32>, vector<56x4xf32>, vector<56x4xf32>, vector<56x4xf32> -> vector<224x4xf32>
    %c8 = arith.constant 8 : index
    %c0_26 = arith.constant 0 : index
    %c0_27 = arith.constant 0 : index
    %79 = vector.load %arg2[%c8, %c0_26, %c0_27] : memref<9x4x8xf32, #tpu.memory_space<vmem>>, vector<1x4x8xf32>
    %80 = vector.shape_cast %79 : vector<1x4x8xf32> to vector<4x8xf32>
    %cst_28 = arith.constant dense<0.000000e+00> : vector<224x8xf32>
    %81 = tpu.matmul %78, %80, %cst_28 {dimension_numbers = #tpu.dot_dimension_numbers<[1], [0], [0], [1], [0, 0, 1, 1], [], []>} : vector<224x4xf32>, vector<4x8xf32>, vector<224x8xf32> -> vector<224x8xf32>
    %82 = arith.addf %73, %81 : vector<224x8xf32>
    %c0_29 = arith.constant 0 : index
    %c0_30 = arith.constant 0 : index
    %83 = vector.load %arg3[%c0_29, %c0_30] : memref<1x8xf32, #tpu.memory_space<vmem>>, vector<1x8xf32>
    %c0_31 = arith.constant 0 : index
    %c0_32 = arith.constant 0 : index
    %84 = vector.load %arg4[%c0_31, %c0_32] : memref<1x8xf32, #tpu.memory_space<vmem>>, vector<1x8xf32>
    %c0_33 = arith.constant 0 : index
    %c0_34 = arith.constant 0 : index
    %85 = vector.load %arg5[%c0_33, %c0_34] : memref<1x8xf32, #tpu.memory_space<vmem>>, vector<1x8xf32>
    %86 = vector.extract_strided_slice %82 {offsets = [0, 0], sizes = [56, 8], strides = [1, 1]} : vector<224x8xf32> to vector<56x8xf32>
    %87 = vector.extract_strided_slice %82 {offsets = [56, 0], sizes = [56, 8], strides = [1, 1]} : vector<224x8xf32> to vector<56x8xf32>
    %88 = arith.maximumf %86, %87 : vector<56x8xf32>
    %89 = vector.extract_strided_slice %82 {offsets = [112, 0], sizes = [56, 8], strides = [1, 1]} : vector<224x8xf32> to vector<56x8xf32>
    %90 = arith.maximumf %88, %89 : vector<56x8xf32>
    %91 = vector.extract_strided_slice %82 {offsets = [168, 0], sizes = [56, 8], strides = [1, 1]} : vector<224x8xf32> to vector<56x8xf32>
    %92 = arith.maximumf %90, %91 : vector<56x8xf32>
    %93 = vector.broadcast %83 : vector<1x8xf32> to vector<56x8xf32>
    %94 = arith.addf %92, %93 : vector<56x8xf32>
    %cst_35 = arith.constant 0.000000e+00 : f32
    %95 = vector.broadcast %cst_35 : f32 to vector<56x8xf32>
    %96 = arith.maximumf %94, %95 : vector<56x8xf32>
    %97 = vector.broadcast %84 : vector<1x8xf32> to vector<56x8xf32>
    %98 = arith.mulf %96, %97 : vector<56x8xf32>
    %99 = vector.broadcast %85 : vector<1x8xf32> to vector<56x8xf32>
    %100 = arith.addf %98, %99 : vector<56x8xf32>
    %c0_36 = arith.constant 0 : index
    %c0_37 = arith.constant 0 : index
    %c0_38 = arith.constant 0 : index
    %101 = vector.load %arg6[%c0_36, %c0_37, %c0_38] : memref<1x56x8xf32, #tpu.memory_space<vmem>>, vector<1x56x8xf32>
    %102 = vector.shape_cast %101 : vector<1x56x8xf32> to vector<56x8xf32>
    %103 = vector.shape_cast %100 : vector<56x8xf32> to vector<1x56x8xf32>
    tpu.vector_store %arg6[%c0_36, %c0_37, %c0_38], %103 {strides = array<i32>} : memref<1x56x8xf32, #tpu.memory_space<vmem>>, vector<1x56x8xf32>,
    return
  }
  func.func @transform_0(%arg0: i32) -> (i32, i32, i32) {
    %c0_i32 = arith.constant 0 : i32
    %c0_i32_0 = arith.constant 0 : i32
    %c0_i32_1 = arith.constant 0 : i32
    return %arg0, %c0_i32, %c0_i32_0 : i32, i32, i32
  }
  func.func @transform_1(%arg0: i32) -> (i32, i32, i32) {
    %c0_i32 = arith.constant 0 : i32
    %c0_i32_0 = arith.constant 0 : i32
    %c0_i32_1 = arith.constant 0 : i32
    %c0_i32_2 = arith.constant 0 : i32
    return %c0_i32, %c0_i32_0, %c0_i32_1 : i32, i32, i32
  }
  func.func @transform_2(%arg0: i32) -> (i32, i32) {
    %c0_i32 = arith.constant 0 : i32
    %c0_i32_0 = arith.constant 0 : i32
    %c0_i32_1 = arith.constant 0 : i32
    return %c0_i32, %c0_i32_0 : i32, i32
  }
  func.func @transform_3(%arg0: i32) -> (i32, i32) {
    %c0_i32 = arith.constant 0 : i32
    %c0_i32_0 = arith.constant 0 : i32
    %c0_i32_1 = arith.constant 0 : i32
    return %c0_i32, %c0_i32_0 : i32, i32
  }
  func.func @transform_4(%arg0: i32) -> (i32, i32) {
    %c0_i32 = arith.constant 0 : i32
    %c0_i32_0 = arith.constant 0 : i32
    %c0_i32_1 = arith.constant 0 : i32
    return %c0_i32, %c0_i32_0 : i32, i32
  }
  func.func @transform_5(%arg0: i32) -> (i32, i32, i32) {
    %c0_i32 = arith.constant 0 : i32
    %c0_i32_0 = arith.constant 0 : i32
    %c0_i32_1 = arith.constant 0 : i32
    return %arg0, %c0_i32, %c0_i32_0 : i32, i32, i32
  }
}

</mosaic_0001>

<llo_original>
// kernel: basic_conv2d.1
$region0: #{basic_conv2d.1}
  #allocation0 [shape = 'u32[]', space=smem, size = 0x4, offset = 0x4, fixed_abs, tag = 'smem constant byte address 0x4 - core index']
  #allocation1 [shape = 'u32[144,128]{1,0:T(1,128)}', space=vmem, size = 0x12000, scoped, tag = 'internal scratch']
  %s0 = inlined_call_operand.vmem [shape: bf16[2,288,4], index: 0, kind: input, shape index: {}]
  %s1 = inlined_call_operand.vmem [shape: f32[9,4,8], index: 1, kind: input, shape index: {}]
  %s2 = inlined_call_operand.vmem [shape: f32[1,8], index: 2, kind: input, shape index: {}]
  %s3 = inlined_call_operand.vmem [shape: f32[1,8], index: 3, kind: input, shape index: {}]
  %s4 = inlined_call_operand.vmem [shape: f32[1,8], index: 4, kind: input, shape index: {}]
  %s5 = inlined_call_operand.vmem [shape: f32[2,56,8], index: 5, kind: output, shape index: {}]
  %s6 = sld [smem:[#allocation0]]
  $region53: #{basic_conv2d.1} parent=0
    _
  %s8 = ssub.s32 1, %s6
  %s9 = scalar_select 0, %s8, %s6
  loop: start=0, step=1, limit=4
  $region2: #{basic_conv2d.1} parent=0 // loop_pre_header
    _
  $region3: #{basic_conv2d.1} parent=0 // loop_header
    %s11 = sphi 0, %s15
    %p12 = scmp.ge.s32.totalorder %s11, 4
    %s21 = sphi 0, %s23
    %s24 = sphi 0, %s21
    %s25 = sphi 0, %s24
    %s41 = sphi 0, %s25
    %s45 = sphi 0, %s45
    %s47 = sphi 0, %s45
    %s48 = sphi 0, %s47
    %s62 = sphi 0, %s48
    %s66 = sphi 0, %s66
    %s68 = sphi 0, %s66
    %s69 = sphi 0, %s68
    %s83 = sphi 0, %s69
    %s87 = sphi 0, %s87
    %s89 = sphi 0, %s87
    %s90 = sphi 0, %s89
    %s104 = sphi 0, %s90
    %s108 = sphi 0, %s108
    %s110 = sphi 0, %s108
    %s111 = sphi 0, %s110
    %s125 = sphi 0, %s111
    %s131 = sphi 0, %s133
    %s134 = sphi 0, %s131
    %s135 = sphi 0, %s134
    %s151 = sphi 0, %s135
  $region4: #{basic_conv2d.1} parent=0 // loop_header_branch
    %14 = sbr.rel (%p12) target = $region8
  $region5: #{basic_conv2d.1} parent=0 // loop_body
    %s16 = ssub.s32 %s11, 1
    %s17 = ssub.s32 %s11, 2
    %s18 = sadd.s32 %s11, 1
    %s19 = ssub.s32 %s11, %s18
    %p20 = scmp.eq.s32.totalorder %s19, 0
    %s22 = sadd.s32 %s21, 1
    %s23 = scalar_select %p20, %s21, %s22
    %p26 = pneg %p20
    %p27 = scmp.eq.s32.totalorder %s11, 1
    %p28 = por %p26, %p27
    %p29 = scmp.ne.s32.totalorder %s21, %s24
    %p30 = scmp.eq.s32.totalorder %s11, 0
    %p31 = por %p29, %p30
    %p32 = scmp.ne.s32.totalorder %s21, %s24
    %p33 = scmp.eq.s32.totalorder %s16, 1
    %p34 = por %p32, %p33
    %p35 = scmp.ne.s32.totalorder %s24, %s25
    %p36 = scmp.eq.s32.totalorder %s16, 0
    %p37 = por %p35, %p36
    %p38 = scmp.ne.s32.totalorder %s24, %s25
    %p39 = scmp.eq.s32.totalorder %s17, 1
    %p40 = por %p38, %p39
    %p42 = scmp.ne.s32.totalorder %s25, %s41
    %p43 = scmp.eq.s32.totalorder %s17, 0
    %p44 = por %p42, %p43
    %s46 = sadd.s32 %s45, 1
    %p49 = scmp.eq.s32.totalorder %s11, 1
    %p50 = scmp.ne.s32.totalorder %s45, %s47
    %p51 = scmp.eq.s32.totalorder %s11, 0
    %p52 = por %p50, %p51
    %p53 = scmp.ne.s32.totalorder %s45, %s47
    %p54 = scmp.eq.s32.totalorder %s16, 1
    %p55 = por %p53, %p54
    %p56 = scmp.ne.s32.totalorder %s47, %s48
    %p57 = scmp.eq.s32.totalorder %s16, 0
    %p58 = por %p56, %p57
    %p59 = scmp.ne.s32.totalorder %s47, %s48
    %p60 = scmp.eq.s32.totalorder %s17, 1
    %p61 = por %p59, %p60
    %p63 = scmp.ne.s32.totalorder %s48, %s62
    %p64 = scmp.eq.s32.totalorder %s17, 0
    %p65 = por %p63, %p64
    %s67 = sadd.s32 %s66, 1
    %p70 = scmp.eq.s32.totalorder %s11, 1
    %p71 = scmp.ne.s32.totalorder %s66, %s68
    %p72 = scmp.eq.s32.totalorder %s11, 0
    %p73 = por %p71, %p72
    %p74 = scmp.ne.s32.totalorder %s66, %s68
    %p75 = scmp.eq.s32.totalorder %s16, 1
    %p76 = por %p74, %p75
    %p77 = scmp.ne.s32.totalorder %s68, %s69
    %p78 = scmp.eq.s32.totalorder %s16, 0
    %p79 = por %p77, %p78
    %p80 = scmp.ne.s32.totalorder %s68, %s69
    %p81 = scmp.eq.s32.totalorder %s17, 1
    %p82 = por %p80, %p81
    %p84 = scmp.ne.s32.totalorder %s69, %s83
    %p85 = scmp.eq.s32.totalorder %s17, 0
    %p86 = por %p84, %p85
    %s88 = sadd.s32 %s87, 1
    %p91 = scmp.eq.s32.totalorder %s11, 1
    %p92 = scmp.ne.s32.totalorder %s87, %s89
    %p93 = scmp.eq.s32.totalorder %s11, 0
    %p94 = por %p92, %p93
    %p95 = scmp.ne.s32.totalorder %s87, %s89
    %p96 = scmp.eq.s32.totalorder %s16, 1
    %p97 = por %p95, %p96
    %p98 = scmp.ne.s32.totalorder %s89, %s90
    %p99 = scmp.eq.s32.totalorder %s16, 0
    %p100 = por %p98, %p99
    %p101 = scmp.ne.s32.totalorder %s89, %s90
    %p102 = scmp.eq.s32.totalorder %s17, 1
    %p103 = por %p101, %p102
    %p105 = scmp.ne.s32.totalorder %s90, %s104
    %p106 = scmp.eq.s32.totalorder %s17, 0
    %p107 = por %p105, %p106
    %s109 = sadd.s32 %s108, 1
    %p112 = scmp.eq.s32.totalorder %s11, 1
    %p113 = scmp.ne.s32.totalorder %s108, %s110
    %p114 = scmp.eq.s32.totalorder %s11, 0
    %p115 = por %p113, %p114
    %p116 = scmp.ne.s32.totalorder %s108, %s110
    %p117 = scmp.eq.s32.totalorder %s16, 1
    %p118 = por %p116, %p117
    %p119 = scmp.ne.s32.totalorder %s110, %s111
    %p120 = scmp.eq.s32.totalorder %s16, 0
    %p121 = por %p119, %p120
    %p122 = scmp.ne.s32.totalorder %s110, %s111
    %p123 = scmp.eq.s32.totalorder %s17, 1
    %p124 = por %p122, %p123
    %p126 = scmp.ne.s32.totalorder %s111, %s125
    %p127 = scmp.eq.s32.totalorder %s17, 0
    %p128 = por %p126, %p127
    %s129 = ssub.s32 %s11, %s18
    %p130 = scmp.eq.s32.totalorder %s129, 0
    %s132 = sadd.s32 %s131, 1
    %s133 = scalar_select %p130, %s131, %s132
    %p136 = pneg %p130
    %p137 = scmp.eq.s32.totalorder %s11, 1
    %p138 = por %p136, %p137
    %p139 = scmp.ne.s32.totalorder %s131, %s134
    %p140 = scmp.eq.s32.totalorder %s11, 0
    %p141 = por %p139, %p140
    %p142 = scmp.ne.s32.totalorder %s131, %s134
    %p143 = scmp.eq.s32.totalorder %s16, 1
    %p144 = por %p142, %p143
    %p145 = scmp.ne.s32.totalorder %s134, %s135
    %p146 = scmp.eq.s32.totalorder %s16, 0
    %p147 = por %p145, %p146
    %p148 = scmp.ne.s32.totalorder %s134, %s135
    %p149 = scmp.eq.s32.totalorder %s17, 1
    %p150 = por %p148, %p149
    %p152 = scmp.ne.s32.totalorder %s135, %s151
    %p153 = scmp.eq.s32.totalorder %s17, 0
    %p154 = por %p152, %p153
    %p155 = scmp.le.s32.totalorder 1, %s11
    %p156 = scmp.lt.s32.totalorder %s11, 3
    %p157 = pnand %p155, %p156
    %p158 = pneg %p157
    // Predicated region
    $region9: #{basic_conv2d.1} parent=5 // pred_check
      _
    $region10: #{basic_conv2d.1} parent=5 // pred_check_branch
      %160 = sbr.rel (%p157) target = $region12
    $region11: #{basic_conv2d.1} parent=5 // pred_region
      %s161 = ssub.s32 %s11, 1
      // Predicated region
      $region13: #{basic_conv2d.1} parent=11 // pred_check
        %p162 = pneg %p58
      $region14: #{basic_conv2d.1} parent=11 // pred_check_branch
        %164 = sbr.rel (%p162) target = $region16
      $region15: #{basic_conv2d.1} parent=11 // pred_region
        _
      $region16: #{basic_conv2d.1} parent=11 // pred_fallthru
        _
      // Predicated region
      $region17: #{basic_conv2d.1} parent=11 // pred_check
        %p165 = pneg %p79
      $region18: #{basic_conv2d.1} parent=11 // pred_check_branch
        %167 = sbr.rel (%p165) target = $region20
      $region19: #{basic_conv2d.1} parent=11 // pred_region
        _
      $region20: #{basic_conv2d.1} parent=11 // pred_fallthru
        _
      // Predicated region
      $region21: #{basic_conv2d.1} parent=11 // pred_check
        %p168 = pneg %p100
      $region22: #{basic_conv2d.1} parent=11 // pred_check_branch
        %170 = sbr.rel (%p168) target = $region24
      $region23: #{basic_conv2d.1} parent=11 // pred_region
        _
      $region24: #{basic_conv2d.1} parent=11 // pred_fallthru
        _
      // Predicated region
      $region25: #{basic_conv2d.1} parent=11 // pred_check
        %p171 = pneg %p121
      $region26: #{basic_conv2d.1} parent=11 // pred_check_branch
        %173 = sbr.rel (%p171) target = $region28
      $region27: #{basic_conv2d.1} parent=11 // pred_region
        _
      $region28: #{basic_conv2d.1} parent=11 // pred_fallthru
        _
    $region12: #{basic_conv2d.1} parent=5 // pred_fallthru
      _
    %p174 = scmp.lt.s32.totalorder %s11, 2
    // Predicated region
    $region29: #{basic_conv2d.1} parent=5 // pred_check
      %p175 = pneg %p174
    $region30: #{basic_conv2d.1} parent=5 // pred_check_branch
      %177 = sbr.rel (%p175) target = $region32
    $region31: #{basic_conv2d.1} parent=5 // pred_region
      // Predicated region
      $region33: #{basic_conv2d.1} parent=31 // pred_check
        %p178 = pneg %p31
      $region34: #{basic_conv2d.1} parent=31 // pred_check_branch
        %180 = sbr.rel (%p178) target = $region36
      $region35: #{basic_conv2d.1} parent=31 // pred_region
        %p181 = scmp.lt.s32.totalorder %s11, 1
        %s182 = scalar_select %p181, %s11, 1
        %s183 = smul.addr %s182, 36
        %s184 = smul.addr %s183, 4
        %s185 = scalar_lea.vmem %s0, %s184
      $region36: #{basic_conv2d.1} parent=31 // pred_fallthru
        _
    $region32: #{basic_conv2d.1} parent=5 // pred_fallthru
      _
    %p186 = scmp.le.s32.totalorder 1, %s11
    %p187 = scmp.lt.s32.totalorder %s11, 3
    %p188 = pnand %p186, %p187
    %p189 = pneg %p188
    // Predicated region
    $region37: #{basic_conv2d.1} parent=5 // pred_check
      _
    $region38: #{basic_conv2d.1} parent=5 // pred_check_branch
      %191 = sbr.rel (%p188) target = $region40
    $region39: #{basic_conv2d.1} parent=5 // pred_region
      %s192 = ssub.s32 %s11, 1
      %p193 = scmp.lt.s32.totalorder %s16, 1
      %s194 = scalar_select %p193, %s16, 1
      %s195 = smul.addr %s194, 36
      %s196 = smul.addr %s195, 4
      %s197 = scalar_lea.vmem %s0, %s196
      %p198 = pneg %p37
      %p199 = pneg %p34
      %p200 = pneg %p58
      %p201 = pneg %p55
      %p202 = pneg %p79
      %p203 = pneg %p76
      %p204 = pneg %p100
      %p205 = pneg %p97
      %p206 = pneg %p121
      %p207 = pneg %p118
      %p208 = pneg %p147
      %p209 = pneg %p144
      %p210 = scmp.lt.s32.totalorder %s16, 1
      %s211 = scalar_select %p210, %s16, 1
      %s212 = smul.addr %s211, 7
      %s213 = smul.addr %s212, 8
      %s214 = scalar_lea.vmem %s5, %s213
      %p215 = scmp.lt.s32.totalorder %s16, 1
      %s216 = scalar_select %p215, %s16, 1
      %s217 = smul.addr %s216, 36
      %s218 = smul.addr %s217, 4
      %s219 = scalar_lea.vmem %s0, %s218
      %p220 = scmp.lt.s32.totalorder %s16, 1
      %s221 = scalar_select %p220, %s16, 1
      %s222 = smul.addr %s221, 7
      %s223 = smul.addr %s222, 8
      %s224 = scalar_lea.vmem %s5, %s223
      %v225 = vld [vmem:[%s219] sm:$0xf]
      %v226 = vld [vmem:[%s219 + $0x4] sm:$0xf]
      %v227 = vld [vmem:[%s219 + $0x8] sm:$0xf]
      %v228 = vld [vmem:[%s219 + $0xc] sm:$0xf]
      %v229 = vld [vmem:[%s219 + $0x10] sm:$0xf]
      %v230 = vld [vmem:[%s219 + $0x14] sm:$0xf]
      %v231 = vld [vmem:[%s219 + $0x18] sm:$0xf]
      %v232 = vld [vmem:[%s219 + $0x1c] sm:$0xf]
      %v233 = vld [vmem:[%s219 + $0x20] sm:$0xf]
      %v234 = vld [vmem:[%s219 + $0x24] sm:$0xf]
      %v235 = vld [vmem:[%s219 + $0x28] sm:$0xf]
      %v236 = vld [vmem:[%s219 + $0x2c] sm:$0xf]
      %v237 = vld [vmem:[%s219 + $0x30] sm:$0xf]
      %v238 = vld [vmem:[%s219 + $0x34] sm:$0xf]
      %v239 = vld [vmem:[%s219 + $0x38] sm:$0xf]
      %v240 = vld [vmem:[%s219 + $0x3c] sm:$0xf]
      %v241 = vld [vmem:[%s219 + $0x40] sm:$0xf]
      %v242 = vld [vmem:[%s219 + $0x44] sm:$0xf]
      %v243 = vld [vmem:[%s219 + $0x48] sm:$0xf]
      %v244 = vld [vmem:[%s219 + $0x4c] sm:$0xf]
      %v245 = vld [vmem:[%s219 + $0x50] sm:$0xf]
      %v246 = vld [vmem:[%s219 + $0x54] sm:$0xf]
      %v247 = vld [vmem:[%s219 + $0x58] sm:$0xf]
      %v248 = vld [vmem:[%s219 + $0x5c] sm:$0xf]
      %v249 = vld [vmem:[%s219 + $0x60] sm:$0xf]
      %v250 = vld [vmem:[%s219 + $0x64] sm:$0xf]
      %v251 = vld [vmem:[%s219 + $0x68] sm:$0xf]
      %v252 = vld [vmem:[%s219 + $0x6c] sm:$0xf]
      %v253 = vld [vmem:[%s219 + $0x70] sm:$0xf]
      %v254 = vld [vmem:[%s219 + $0x74] sm:$0xf]
      %v255 = vld [vmem:[%s219 + $0x78] sm:$0xf]
      %v256 = vld [vmem:[%s219 + $0x7c] sm:$0xf]
      %v257 = vld [vmem:[%s219 + $0x80] sm:$0xf]
      %v258 = vld [vmem:[%s219 + $0x84] sm:$0xf]
      %v259 = vld [vmem:[%s219 + $0x88] sm:$0xf]
      %v260 = vld [vmem:[%s219 + $0x8c] sm:$0xf]
      %v261 = vunpack.c.l.bf16 %v225
      %v262 = vunpack.c.l.bf16 %v226
      %v263 = vunpack.c.l.bf16 %v227
      %v264 = vunpack.c.l.bf16 %v228
      %v265 = vunpack.c.l.bf16 %v229
      %v266 = vunpack.c.l.bf16 %v230
      %v267 = vunpack.c.l.bf16 %v231
      %v268 = vunpack.c.l.bf16 %v232
      %v269 = vunpack.c.l.bf16 %v233
      %v270 = vunpack.c.l.bf16 %v234
      %v271 = vunpack.c.l.bf16 %v235
      %v272 = vunpack.c.l.bf16 %v236
      %v273 = vunpack.c.l.bf16 %v237
      %v274 = vunpack.c.l.bf16 %v238
      %v275 = vunpack.c.l.bf16 %v239
      %v276 = vunpack.c.l.bf16 %v240
      %v277 = vunpack.c.l.bf16 %v241
      %v278 = vunpack.c.l.bf16 %v242
      %v279 = vunpack.c.l.bf16 %v243
      %v280 = vunpack.c.l.bf16 %v244
      %v281 = vunpack.c.l.bf16 %v245
      %v282 = vunpack.c.l.bf16 %v246
      %v283 = vunpack.c.l.bf16 %v247
      %v284 = vunpack.c.l.bf16 %v248
      %v285 = vunpack.c.l.bf16 %v249
      %v286 = vunpack.c.l.bf16 %v250
      %v287 = vunpack.c.l.bf16 %v251
      %v288 = vunpack.c.l.bf16 %v252
      %v289 = vunpack.c.l.bf16 %v253
      %v290 = vunpack.c.l.bf16 %v254
      %v291 = vunpack.c.l.bf16 %v255
      %v292 = vunpack.c.l.bf16 %v256
      %v293 = vunpack.c.l.bf16 %v257
      %v294 = vunpack.c.l.bf16 %v258
      %v295 = vunpack.c.l.bf16 %v259
      %v296 = vunpack.c.l.bf16 %v260
      %v297 = vld [vmem:[%s1] sm:$0xf]
      %vm306 = vcmask 1046528
      %v307 = vrot.slane %v261, 1
      %v308 = vrot.slane %v262, 1
      %v309 = vsel %vm306, %v307, %v308
      %v310 = vrot.slane %v263, 1
      %v311 = vsel %vm306, %v308, %v310
      %v312 = vrot.slane %v264, 1
      %v313 = vsel %vm306, %v310, %v312
      %v314 = vrot.slane %v265, 1
      %v315 = vsel %vm306, %v312, %v314
      %v316 = vrot.slane %v266, 1
      %v317 = vsel %vm306, %v314, %v316
      %v318 = vrot.slane %v267, 1
      %v319 = vsel %vm306, %v316, %v318
      %v320 = vrot.slane %v268, 1
      %v321 = vsel %vm306, %v318, %v320
      %v330 = vrot.slane %v279, 1
      %v331 = vrot.slane %v280, 1
      %v332 = vsel %vm306, %v330, %v331
      %v333 = vrot.slane %v281, 1
      %v334 = vsel %vm306, %v331, %v333
      %v335 = vrot.slane %v282, 1
      %v336 = vsel %vm306, %v333, %v335
      %v337 = vrot.slane %v283, 1
      %v338 = vsel %vm306, %v335, %v337
      %v339 = vrot.slane %v284, 1
      %v340 = vsel %vm306, %v337, %v339
      %v341 = vrot.slane %v285, 1
      %v342 = vsel %vm306, %v339, %v341
      %v343 = vrot.slane %v286, 1
      %v344 = vsel %vm306, %v341, %v343
      %s345 = scalar_lea.vmem %s1, 4
      %v346 = vld [vmem:[%s345] sm:$0xf]
      %vm347 = vcmask 31744
      %v349 = vsel %vm347, %v270, 0
      %v352 = vsel %vm347, %v271, 0
      %v355 = vsel %vm347, %v272, 0
      %v358 = vsel %vm347, %v273, 0
      %v361 = vsel %vm347, %v274, 0
      %v364 = vsel %vm347, %v275, 0
      %v367 = vsel %vm347, %v276, 0
      %v369 = vsel %vm347, %v309, 0
      %v371 = vsel %vm347, %v311, 0
      %v373 = vsel %vm347, %v313, 0
      %v375 = vsel %vm347, %v315, 0
      %v377 = vsel %vm347, %v317, 0
      %v379 = vsel %vm347, %v319, 0
      %v381 = vsel %vm347, %v321, 0
      %v384 = vsel %vm347, %v288, 0
      %v387 = vsel %vm347, %v289, 0
      %v390 = vsel %vm347, %v290, 0
      %v393 = vsel %vm347, %v291, 0
      %v396 = vsel %vm347, %v292, 0
      %v399 = vsel %vm347, %v293, 0
      %v402 = vsel %vm347, %v294, 0
      %v404 = vsel %vm347, %v332, 0
      %v406 = vsel %vm347, %v334, 0
      %v408 = vsel %vm347, %v336, 0
      %v410 = vsel %vm347, %v338, 0
      %v412 = vsel %vm347, %v340, 0
      %v414 = vsel %vm347, %v342, 0
      %v416 = vsel %vm347, %v344, 0
      %vm418 = vcmask 1043456
      %v420 = vsel %vm418, %v346, 0
      %422 = vmatprep.subr.mxu0 0.0
      %423 = vmatpush1.msra.mxu0 0.0
      %424 = vmatprep.subr.mxu0 0.0
      %425 = vmatpush1.msra.mxu0 0.0
      %426 = vmatprep.subr.mxu0 0.0
      %427 = vmatpush1.msra.mxu0 0.0
      %428 = vmatprep.subr.mxu0 0.0
      %429 = vmatpush1.msra.mxu0 0.0
      %430 = vmatprep.subr.mxu0 0.0
      %431 = vmatpush1.msra.mxu0 0.0
      %432 = vmatprep.subr.mxu0 0.0
      %433 = vmatpush1.msra.mxu0 0.0
      %434 = vmatprep.subr.mxu0 0.0
      %435 = vmatpush1.msra.mxu0 0.0
      %436 = vmatprep.subr.mxu0 0.0
      %437 = vmatpush1.msra.mxu0 0.0
      %438 = vmatprep.subr.mxu0 0.0
      %439 = vmatpush1.msra.mxu0 0.0
      %440 = vmatprep.subr.mxu0 0.0
      %441 = vmatpush1.msra.mxu0 0.0
      %442 = vmatprep.subr.mxu0 0.0
      %443 = vmatpush1.msra.mxu0 0.0
      %444 = vmatprep.subr.mxu0 0.0
      %445 = vmatpush1.msra.mxu0 0.0
      %446 = vmatprep.subr.mxu0 0.0
      %447 = vmatpush1.msra.mxu0 0.0
      %448 = vmatprep.subr.mxu0 0.0
      %449 = vmatpush1.msra.mxu0 0.0
      %450 = vmatprep.subr.mxu0 0.0
      %451 = vmatpush1.msra.mxu0 0.0
      %452 = vmatprep.subr.mxu0 0.0
      %453 = vmatpush1.msra.mxu0 %v420
      %454 = vmatprep.subr.mxu0 0.0
      %455 = vmatpush2.msra.mxu0 0.0
      %456 = vmatprep.subr.mxu0 0.0
      %457 = vmatpush2.msra.mxu0 0.0
      %458 = vmatprep.subr.mxu0 0.0
      %459 = vmatpush2.msra.mxu0 0.0
      %460 = vmatprep.subr.mxu0 0.0
      %461 = vmatpush2.msra.mxu0 0.0
      %462 = vmatprep.subr.mxu0 0.0
      %463 = vmatpush2.msra.mxu0 0.0
      %464 = vmatprep.subr.mxu0 0.0
      %465 = vmatpush2.msra.mxu0 0.0
      %466 = vmatprep.subr.mxu0 0.0
      %467 = vmatpush2.msra.mxu0 0.0
      %468 = vmatprep.subr.mxu0 0.0
      %469 = vmatpush2.msra.mxu0 0.0
      %470 = vmatprep.subr.mxu0 0.0
      %471 = vmatpush2.msra.mxu0 0.0
      %472 = vmatprep.subr.mxu0 0.0
      %473 = vmatpush2.msra.mxu0 0.0
      %474 = vmatprep.subr.mxu0 0.0
      %475 = vmatpush2.msra.mxu0 0.0
      %476 = vmatprep.subr.mxu0 0.0
      %477 = vmatpush2.msra.mxu0 0.0
      %478 = vmatprep.subr.mxu0 0.0
      %479 = vmatpush2.msra.mxu0 0.0
      %480 = vmatprep.subr.mxu0 0.0
      %481 = vmatpush2.msra.mxu0 0.0
      %482 = vmatprep.subr.mxu0 0.0
      %483 = vmatpush2.msra.mxu0 0.0
      %484 = vmatprep.subr.mxu0 0.0
      %485 = vmatpush2.msra.mxu0 0.0
      %486 = vmatprep.mubr.f32.mxu0 0.0
      %487 = vmatmul.mubr.f32.gmra.mxu0 %v349
      %v488 = vpop.f32.mrf.mxu0
      %v489 = vadd.f32 0.0, %v488
      %v490 = vpop.f32.mrf.mxu0
      %491 = vmatprep.mubr.f32.mxu0 0.0
      %492 = vmatmul.mubr.f32.gmra.mxu0 %v352
      %v493 = vpop.f32.mrf.mxu0
      %v494 = vadd.f32 0.0, %v493
      %v495 = vpop.f32.mrf.mxu0
      %496 = vmatprep.mubr.f32.mxu0 0.0
      %497 = vmatmul.mubr.f32.gmra.mxu0 %v355
      %v498 = vpop.f32.mrf.mxu0
      %v499 = vadd.f32 0.0, %v498
      %v500 = vpop.f32.mrf.mxu0
      %501 = vmatprep.mubr.f32.mxu0 0.0
      %502 = vmatmul.mubr.f32.gmra.mxu0 %v358
      %v503 = vpop.f32.mrf.mxu0
      %v504 = vadd.f32 0.0, %v503
      %v505 = vpop.f32.mrf.mxu0
      %506 = vmatprep.mubr.f32.mxu0 0.0
      %507 = vmatmul.mubr.f32.gmra.mxu0 %v361
      %v508 = vpop.f32.mrf.mxu0
      %v509 = vadd.f32 0.0, %v508
      %v510 = vpop.f32.mrf.mxu0
      %511 = vmatprep.mubr.f32.mxu0 0.0
      %512 = vmatmul.mubr.f32.gmra.mxu0 %v364
      %v513 = vpop.f32.mrf.mxu0
      %v514 = vadd.f32 0.0, %v513
      %v515 = vpop.f32.mrf.mxu0
      %516 = vmatprep.mubr.f32.mxu0 0.0
      %517 = vmatmul.mubr.f32.gmra.mxu0 %v367
      %v518 = vpop.f32.mrf.mxu0
      %v519 = vadd.f32 0.0, %v518
      %v520 = vpop.f32.mrf.mxu0
      %521 = vmatprep.mubr.f32.mxu0 0.0
      %522 = vmatmul.mubr.f32.gmra.mxu0 %v369
      %v523 = vpop.f32.mrf.mxu0
      %v524 = vadd.f32 0.0, %v523
      %v525 = vpop.f32.mrf.mxu0
      %526 = vmatprep.mubr.f32.mxu0 0.0
      %527 = vmatmul.mubr.f32.gmra.mxu0 %v371
      %v528 = vpop.f32.mrf.mxu0
      %v529 = vadd.f32 0.0, %v528
      %v530 = vpop.f32.mrf.mxu0
      %531 = vmatprep.mubr.f32.mxu0 0.0
      %532 = vmatmul.mubr.f32.gmra.mxu0 %v373
      %v533 = vpop.f32.mrf.mxu0
      %v534 = vadd.f32 0.0, %v533
      %v535 = vpop.f32.mrf.mxu0
      %536 = vmatprep.mubr.f32.mxu0 0.0
      %537 = vmatmul.mubr.f32.gmra.mxu0 %v375
      %v538 = vpop.f32.mrf.mxu0
      %v539 = vadd.f32 0.0, %v538
      %v540 = vpop.f32.mrf.mxu0
      %541 = vmatprep.mubr.f32.mxu0 0.0
      %542 = vmatmul.mubr.f32.gmra.mxu0 %v377
      %v543 = vpop.f32.mrf.mxu0
      %v544 = vadd.f32 0.0, %v543
      %v545 = vpop.f32.mrf.mxu0
      %546 = vmatprep.mubr.f32.mxu0 0.0
      %547 = vmatmul.mubr.f32.gmra.mxu0 %v379
      %v548 = vpop.f32.mrf.mxu0
      %v549 = vadd.f32 0.0, %v548
      %v550 = vpop.f32.mrf.mxu0
      %551 = vmatprep.mubr.f32.mxu0 0.0
      %552 = vmatmul.mubr.f32.gmra.mxu0 %v381
      %v553 = vpop.f32.mrf.mxu0
      %v554 = vadd.f32 0.0, %v553
      %v555 = vpop.f32.mrf.mxu0
      %556 = vmatprep.mubr.f32.mxu0 0.0
      %557 = vmatmul.mubr.f32.gmra.mxu0 %v384
      %v558 = vpop.f32.mrf.mxu0
      %v559 = vadd.f32 0.0, %v558
      %v560 = vpop.f32.mrf.mxu0
      %561 = vmatprep.mubr.f32.mxu0 0.0
      %562 = vmatmul.mubr.f32.gmra.mxu0 %v387
      %v563 = vpop.f32.mrf.mxu0
      %v564 = vadd.f32 0.0, %v563
      %v565 = vpop.f32.mrf.mxu0
      %566 = vmatprep.mubr.f32.mxu0 0.0
      %567 = vmatmul.mubr.f32.gmra.mxu0 %v390
      %v568 = vpop.f32.mrf.mxu0
      %v569 = vadd.f32 0.0, %v568
      %v570 = vpop.f32.mrf.mxu0
      %571 = vmatprep.mubr.f32.mxu0 0.0
      %572 = vmatmul.mubr.f32.gmra.mxu0 %v393
      %v573 = vpop.f32.mrf.mxu0
      %v574 = vadd.f32 0.0, %v573
      %v575 = vpop.f32.mrf.mxu0
      %576 = vmatprep.mubr.f32.mxu0 0.0
      %577 = vmatmul.mubr.f32.gmra.mxu0 %v396
      %v578 = vpop.f32.mrf.mxu0
      %v579 = vadd.f32 0.0, %v578
      %v580 = vpop.f32.mrf.mxu0
      %581 = vmatprep.mubr.f32.mxu0 0.0
      %582 = vmatmul.mubr.f32.gmra.mxu0 %v399
      %v583 = vpop.f32.mrf.mxu0
      %v584 = vadd.f32 0.0, %v583
      %v585 = vpop.f32.mrf.mxu0
      %586 = vmatprep.mubr.f32.mxu0 0.0
      %587 = vmatmul.mubr.f32.gmra.mxu0 %v402
      %v588 = vpop.f32.mrf.mxu0
      %v589 = vadd.f32 0.0, %v588
      %v590 = vpop.f32.mrf.mxu0
      %591 = vmatprep.mubr.f32.mxu0 0.0
      %592 = vmatmul.mubr.f32.gmra.mxu0 %v404
      %v593 = vpop.f32.mrf.mxu0
      %v594 = vadd.f32 0.0, %v593
      %v595 = vpop.f32.mrf.mxu0
      %596 = vmatprep.mubr.f32.mxu0 0.0
      %597 = vmatmul.mubr.f32.gmra.mxu0 %v406
      %v598 = vpop.f32.mrf.mxu0
      %v599 = vadd.f32 0.0, %v598
      %v600 = vpop.f32.mrf.mxu0
      %601 = vmatprep.mubr.f32.mxu0 0.0
      %602 = vmatmul.mubr.f32.gmra.mxu0 %v408
      %v603 = vpop.f32.mrf.mxu0
      %v604 = vadd.f32 0.0, %v603
      %v605 = vpop.f32.mrf.mxu0
      %606 = vmatprep.mubr.f32.mxu0 0.0
      %607 = vmatmul.mubr.f32.gmra.mxu0 %v410
      %v608 = vpop.f32.mrf.mxu0
      %v609 = vadd.f32 0.0, %v608
      %v610 = vpop.f32.mrf.mxu0
      %611 = vmatprep.mubr.f32.mxu0 0.0
      %612 = vmatmul.mubr.f32.gmra.mxu0 %v412
      %v613 = vpop.f32.mrf.mxu0
      %v614 = vadd.f32 0.0, %v613
      %v615 = vpop.f32.mrf.mxu0
      %616 = vmatprep.mubr.f32.mxu0 0.0
      %617 = vmatmul.mubr.f32.gmra.mxu0 %v414
      %v618 = vpop.f32.mrf.mxu0
      %v619 = vadd.f32 0.0, %v618
      %v620 = vpop.f32.mrf.mxu0
      %621 = vmatprep.mubr.f32.mxu0 0.0
      %622 = vmatmul.mubr.f32.gmra.mxu0 %v416
      %v623 = vpop.f32.mrf.mxu0
      %v624 = vadd.f32 0.0, %v623
      %v625 = vpop.f32.mrf.mxu0
      %626 = vdwg.mxu0
      %v627 = vsel %vm347, %v261, 0
      %v629 = vsel %vm347, %v262, 0
      %v631 = vsel %vm347, %v263, 0
      %v633 = vsel %vm347, %v264, 0
      %v635 = vsel %vm347, %v265, 0
      %v637 = vsel %vm347, %v266, 0
      %v639 = vsel %vm347, %v267, 0
      %v641 = vsel %vm347, %v279, 0
      %v643 = vsel %vm347, %v280, 0
      %v645 = vsel %vm347, %v281, 0
      %v647 = vsel %vm347, %v282, 0
      %v649 = vsel %vm347, %v283, 0
      %v651 = vsel %vm347, %v284, 0
      %v653 = vsel %vm347, %v285, 0
      %v656 = vsel %vm418, %v297, 0
      %658 = vmatprep.subr.mxu0 0.0
      %659 = vmatpush1.msra.mxu0 0.0
      %660 = vmatprep.subr.mxu0 0.0
      %661 = vmatpush1.msra.mxu0 0.0
      %662 = vmatprep.subr.mxu0 0.0
      %663 = vmatpush1.msra.mxu0 0.0
      %664 = vmatprep.subr.mxu0 0.0
      %665 = vmatpush1.msra.mxu0 0.0
      %666 = vmatprep.subr.mxu0 0.0
      %667 = vmatpush1.msra.mxu0 0.0
      %668 = vmatprep.subr.mxu0 0.0
      %669 = vmatpush1.msra.mxu0 0.0
      %670 = vmatprep.subr.mxu0 0.0
      %671 = vmatpush1.msra.mxu0 0.0
      %672 = vmatprep.subr.mxu0 0.0
      %673 = vmatpush1.msra.mxu0 0.0
      %674 = vmatprep.subr.mxu0 0.0
      %675 = vmatpush1.msra.mxu0 0.0
      %676 = vmatprep.subr.mxu0 0.0
      %677 = vmatpush1.msra.mxu0 0.0
      %678 = vmatprep.subr.mxu0 0.0
      %679 = vmatpush1.msra.mxu0 0.0
      %680 = vmatprep.subr.mxu0 0.0
      %681 = vmatpush1.msra.mxu0 0.0
      %682 = vmatprep.subr.mxu0 0.0
      %683 = vmatpush1.msra.mxu0 0.0
      %684 = vmatprep.subr.mxu0 0.0
      %685 = vmatpush1.msra.mxu0 0.0
      %686 = vmatprep.subr.mxu0 0.0
      %687 = vmatpush1.msra.mxu0 0.0
      %688 = vmatprep.subr.mxu0 0.0
      %689 = vmatpush1.msra.mxu0 %v656
      %690 = vmatprep.subr.mxu0 0.0
      %691 = vmatpush2.msra.mxu0 0.0
      %692 = vmatprep.subr.mxu0 0.0
      %693 = vmatpush2.msra.mxu0 0.0
      %694 = vmatprep.subr.mxu0 0.0
      %695 = vmatpush2.msra.mxu0 0.0
      %696 = vmatprep.subr.mxu0 0.0
      %697 = vmatpush2.msra.mxu0 0.0
      %698 = vmatprep.subr.mxu0 0.0
      %699 = vmatpush2.msra.mxu0 0.0
      %700 = vmatprep.subr.mxu0 0.0
      %701 = vmatpush2.msra.mxu0 0.0
      %702 = vmatprep.subr.mxu0 0.0
      %703 = vmatpush2.msra.mxu0 0.0
      %704 = vmatprep.subr.mxu0 0.0
      %705 = vmatpush2.msra.mxu0 0.0
      %706 = vmatprep.subr.mxu0 0.0
      %707 = vmatpush2.msra.mxu0 0.0
      %708 = vmatprep.subr.mxu0 0.0
      %709 = vmatpush2.msra.mxu0 0.0
      %710 = vmatprep.subr.mxu0 0.0
      %711 = vmatpush2.msra.mxu0 0.0
      %712 = vmatprep.subr.mxu0 0.0
      %713 = vmatpush2.msra.mxu0 0.0
      %714 = vmatprep.subr.mxu0 0.0
      %715 = vmatpush2.msra.mxu0 0.0
      %716 = vmatprep.subr.mxu0 0.0
      %717 = vmatpush2.msra.mxu0 0.0
      %718 = vmatprep.subr.mxu0 0.0
      %719 = vmatpush2.msra.mxu0 0.0
      %720 = vmatprep.subr.mxu0 0.0
      %721 = vmatpush2.msra.mxu0 0.0
      %722 = vmatprep.mubr.f32.mxu0 0.0
      %723 = vmatmul.mubr.f32.gmra.mxu0 %v627
      %v724 = vpop.f32.mrf.mxu0
      %v725 = vadd.f32 %v489, %v724
      %v726 = vpop.f32.mrf.mxu0
      %727 = vmatprep.mubr.f32.mxu0 0.0
      %728 = vmatmul.mubr.f32.gmra.mxu0 %v629
      %v729 = vpop.f32.mrf.mxu0
      %v730 = vadd.f32 %v494, %v729
      %v731 = vpop.f32.mrf.mxu0
      %732 = vmatprep.mubr.f32.mxu0 0.0
      %733 = vmatmul.mubr.f32.gmra.mxu0 %v631
      %v734 = vpop.f32.mrf.mxu0
      %v735 = vadd.f32 %v499, %v734
      %v736 = vpop.f32.mrf.mxu0
      %737 = vmatprep.mubr.f32.mxu0 0.0
      %738 = vmatmul.mubr.f32.gmra.mxu0 %v633
      %v739 = vpop.f32.mrf.mxu0
      %v740 = vadd.f32 %v504, %v739
      %v741 = vpop.f32.mrf.mxu0
      %742 = vmatprep.mubr.f32.mxu0 0.0
      %743 = vmatmul.mubr.f32.gmra.mxu0 %v635
      %v744 = vpop.f32.mrf.mxu0
      %v745 = vadd.f32 %v509, %v744
      %v746 = vpop.f32.mrf.mxu0
      %747 = vmatprep.mubr.f32.mxu0 0.0
      %748 = vmatmul.mubr.f32.gmra.mxu0 %v637
      %v749 = vpop.f32.mrf.mxu0
      %v750 = vadd.f32 %v514, %v749
      %v751 = vpop.f32.mrf.mxu0
      %752 = vmatprep.mubr.f32.mxu0 0.0
      %753 = vmatmul.mubr.f32.gmra.mxu0 %v639
      %v754 = vpop.f32.mrf.mxu0
      %v755 = vadd.f32 %v519, %v754
      %v756 = vpop.f32.mrf.mxu0
      %757 = vmatprep.mubr.f32.mxu0 0.0
      %758 = vmatmul.mubr.f32.gmra.mxu0 %v349
      %v759 = vpop.f32.mrf.mxu0
      %v760 = vadd.f32 %v524, %v759
      %v761 = vpop.f32.mrf.mxu0
      %762 = vmatprep.mubr.f32.mxu0 0.0
      %763 = vmatmul.mubr.f32.gmra.mxu0 %v352
      %v764 = vpop.f32.mrf.mxu0
      %v765 = vadd.f32 %v529, %v764
      %v766 = vpop.f32.mrf.mxu0
      %767 = vmatprep.mubr.f32.mxu0 0.0
      %768 = vmatmul.mubr.f32.gmra.mxu0 %v355
      %v769 = vpop.f32.mrf.mxu0
      %v770 = vadd.f32 %v534, %v769
      %v771 = vpop.f32.mrf.mxu0
      %772 = vmatprep.mubr.f32.mxu0 0.0
      %773 = vmatmul.mubr.f32.gmra.mxu0 %v358
      %v774 = vpop.f32.mrf.mxu0
      %v775 = vadd.f32 %v539, %v774
      %v776 = vpop.f32.mrf.mxu0
      %777 = vmatprep.mubr.f32.mxu0 0.0
      %778 = vmatmul.mubr.f32.gmra.mxu0 %v361
      %v779 = vpop.f32.mrf.mxu0
      %v780 = vadd.f32 %v544, %v779
      %v781 = vpop.f32.mrf.mxu0
      %782 = vmatprep.mubr.f32.mxu0 0.0
      %783 = vmatmul.mubr.f32.gmra.mxu0 %v364
      %v784 = vpop.f32.mrf.mxu0
      %v785 = vadd.f32 %v549, %v784
      %v786 = vpop.f32.mrf.mxu0
      %787 = vmatprep.mubr.f32.mxu0 0.0
      %788 = vmatmul.mubr.f32.gmra.mxu0 %v367
      %v789 = vpop.f32.mrf.mxu0
      %v790 = vadd.f32 %v554, %v789
      %v791 = vpop.f32.mrf.mxu0
      %792 = vmatprep.mubr.f32.mxu0 0.0
      %793 = vmatmul.mubr.f32.gmra.mxu0 %v641
      %v794 = vpop.f32.mrf.mxu0
      %v795 = vadd.f32 %v559, %v794
      %v796 = vpop.f32.mrf.mxu0
      %797 = vmatprep.mubr.f32.mxu0 0.0
      %798 = vmatmul.mubr.f32.gmra.mxu0 %v643
      %v799 = vpop.f32.mrf.mxu0
      %v800 = vadd.f32 %v564, %v799
      %v801 = vpop.f32.mrf.mxu0
      %802 = vmatprep.mubr.f32.mxu0 0.0
      %803 = vmatmul.mubr.f32.gmra.mxu0 %v645
      %v804 = vpop.f32.mrf.mxu0
      %v805 = vadd.f32 %v569, %v804
      %v806 = vpop.f32.mrf.mxu0
      %807 = vmatprep.mubr.f32.mxu0 0.0
      %808 = vmatmul.mubr.f32.gmra.mxu0 %v647
      %v809 = vpop.f32.mrf.mxu0
      %v810 = vadd.f32 %v574, %v809
      %v811 = vpop.f32.mrf.mxu0
      %812 = vmatprep.mubr.f32.mxu0 0.0
      %813 = vmatmul.mubr.f32.gmra.mxu0 %v649
      %v814 = vpop.f32.mrf.mxu0
      %v815 = vadd.f32 %v579, %v814
      %v816 = vpop.f32.mrf.mxu0
      %817 = vmatprep.mubr.f32.mxu0 0.0
      %818 = vmatmul.mubr.f32.gmra.mxu0 %v651
      %v819 = vpop.f32.mrf.mxu0
      %v820 = vadd.f32 %v584, %v819
      %v821 = vpop.f32.mrf.mxu0
      %822 = vmatprep.mubr.f32.mxu0 0.0
      %823 = vmatmul.mubr.f32.gmra.mxu0 %v653
      %v824 = vpop.f32.mrf.mxu0
      %v825 = vadd.f32 %v589, %v824
      %v826 = vpop.f32.mrf.mxu0
      %827 = vmatprep.mubr.f32.mxu0 0.0
      %828 = vmatmul.mubr.f32.gmra.mxu0 %v384
      %v829 = vpop.f32.mrf.mxu0
      %v830 = vadd.f32 %v594, %v829
      %v831 = vpop.f32.mrf.mxu0
      %832 = vmatprep.mubr.f32.mxu0 0.0
      %833 = vmatmul.mubr.f32.gmra.mxu0 %v387
      %v834 = vpop.f32.mrf.mxu0
      %v835 = vadd.f32 %v599, %v834
      %v836 = vpop.f32.mrf.mxu0
      %837 = vmatprep.mubr.f32.mxu0 0.0
      %838 = vmatmul.mubr.f32.gmra.mxu0 %v390
      %v839 = vpop.f32.mrf.mxu0
      %v840 = vadd.f32 %v604, %v839
      %v841 = vpop.f32.mrf.mxu0
      %842 = vmatprep.mubr.f32.mxu0 0.0
      %843 = vmatmul.mubr.f32.gmra.mxu0 %v393
      %v844 = vpop.f32.mrf.mxu0
      %v845 = vadd.f32 %v609, %v844
      %v846 = vpop.f32.mrf.mxu0
      %847 = vmatprep.mubr.f32.mxu0 0.0
      %848 = vmatmul.mubr.f32.gmra.mxu0 %v396
      %v849 = vpop.f32.mrf.mxu0
      %v850 = vadd.f32 %v614, %v849
      %v851 = vpop.f32.mrf.mxu0
      %852 = vmatprep.mubr.f32.mxu0 0.0
      %853 = vmatmul.mubr.f32.gmra.mxu0 %v399
      %v854 = vpop.f32.mrf.mxu0
      %v855 = vadd.f32 %v619, %v854
      %v856 = vpop.f32.mrf.mxu0
      %857 = vmatprep.mubr.f32.mxu0 0.0
      %858 = vmatmul.mubr.f32.gmra.mxu0 %v402
      %v859 = vpop.f32.mrf.mxu0
      %v860 = vadd.f32 %v624, %v859
      %v861 = vpop.f32.mrf.mxu0
      %862 = vdwg.mxu0
      %v864 = vrot.slane %v270, 1
      %v865 = vrot.slane %v271, 1
      %v866 = vsel %vm306, %v864, %v865
      %v867 = vrot.slane %v272, 1
      %v868 = vsel %vm306, %v865, %v867
      %v869 = vrot.slane %v273, 1
      %v870 = vsel %vm306, %v867, %v869
      %v871 = vrot.slane %v274, 1
      %v872 = vsel %vm306, %v869, %v871
      %v873 = vrot.slane %v275, 1
      %v874 = vsel %vm306, %v871, %v873
      %v875 = vrot.slane %v276, 1
      %v876 = vsel %vm306, %v873, %v875
      %v877 = vrot.slane %v277, 1
      %v878 = vsel %vm306, %v875, %v877
      %v880 = vrot.slane %v288, 1
      %v881 = vrot.slane %v289, 1
      %v882 = vsel %vm306, %v880, %v881
      %v883 = vrot.slane %v290, 1
      %v884 = vsel %vm306, %v881, %v883
      %v885 = vrot.slane %v291, 1
      %v886 = vsel %vm306, %v883, %v885
      %v887 = vrot.slane %v292, 1
      %v888 = vsel %vm306, %v885, %v887
      %v889 = vrot.slane %v293, 1
      %v890 = vsel %vm306, %v887, %v889
      %v891 = vrot.slane %v294, 1
      %v892 = vsel %vm306, %v889, %v891
      %v893 = vrot.slane %v295, 1
      %v894 = vsel %vm306, %v891, %v893
      %s895 = scalar_lea.vmem %s1, 8
      %v896 = vld [vmem:[%s895] sm:$0xf]
      %v897 = vsel %vm347, %v866, 0
      %v899 = vsel %vm347, %v868, 0
      %v901 = vsel %vm347, %v870, 0
      %v903 = vsel %vm347, %v872, 0
      %v905 = vsel %vm347, %v874, 0
      %v907 = vsel %vm347, %v876, 0
      %v909 = vsel %vm347, %v878, 0
      %v911 = vsel %vm347, %v882, 0
      %v913 = vsel %vm347, %v884, 0
      %v915 = vsel %vm347, %v886, 0
      %v917 = vsel %vm347, %v888, 0
      %v919 = vsel %vm347, %v890, 0
      %v921 = vsel %vm347, %v892, 0
      %v923 = vsel %vm347, %v894, 0
      %v926 = vsel %vm418, %v896, 0
      %928 = vmatprep.subr.mxu0 0.0
      %929 = vmatpush1.msra.mxu0 0.0
      %930 = vmatprep.subr.mxu0 0.0
      %931 = vmatpush1.msra.mxu0 0.0
      %932 = vmatprep.subr.mxu0 0.0
      %933 = vmatpush1.msra.mxu0 0.0
      %934 = vmatprep.subr.mxu0 0.0
      %935 = vmatpush1.msra.mxu0 0.0
      %936 = vmatprep.subr.mxu0 0.0
      %937 = vmatpush1.msra.mxu0 0.0
      %938 = vmatprep.subr.mxu0 0.0
      %939 = vmatpush1.msra.mxu0 0.0
      %940 = vmatprep.subr.mxu0 0.0
      %941 = vmatpush1.msra.mxu0 0.0
      %942 = vmatprep.subr.mxu0 0.0
      %943 = vmatpush1.msra.mxu0 0.0
      %944 = vmatprep.subr.mxu0 0.0
      %945 = vmatpush1.msra.mxu0 0.0
      %946 = vmatprep.subr.mxu0 0.0
      %947 = vmatpush1.msra.mxu0 0.0
      %948 = vmatprep.subr.mxu0 0.0
      %949 = vmatpush1.msra.mxu0 0.0
      %950 = vmatprep.subr.mxu0 0.0
      %951 = vmatpush1.msra.mxu0 0.0
      %952 = vmatprep.subr.mxu0 0.0
      %953 = vmatpush1.msra.mxu0 0.0
      %954 = vmatprep.subr.mxu0 0.0
      %955 = vmatpush1.msra.mxu0 0.0
      %956 = vmatprep.subr.mxu0 0.0
      %957 = vmatpush1.msra.mxu0 0.0
      %958 = vmatprep.subr.mxu0 0.0
      %959 = vmatpush1.msra.mxu0 %v926
      %960 = vmatprep.subr.mxu0 0.0
      %961 = vmatpush2.msra.mxu0 0.0
      %962 = vmatprep.subr.mxu0 0.0
      %963 = vmatpush2.msra.mxu0 0.0
      %964 = vmatprep.subr.mxu0 0.0
      %965 = vmatpush2.msra.mxu0 0.0
      %966 = vmatprep.subr.mxu0 0.0
      %967 = vmatpush2.msra.mxu0 0.0
      %968 = vmatprep.subr.mxu0 0.0
      %969 = vmatpush2.msra.mxu0 0.0
      %970 = vmatprep.subr.mxu0 0.0
      %971 = vmatpush2.msra.mxu0 0.0
      %972 = vmatprep.subr.mxu0 0.0
      %973 = vmatpush2.msra.mxu0 0.0
      %974 = vmatprep.subr.mxu0 0.0
      %975 = vmatpush2.msra.mxu0 0.0
      %976 = vmatprep.subr.mxu0 0.0
      %977 = vmatpush2.msra.mxu0 0.0
      %978 = vmatprep.subr.mxu0 0.0
      %979 = vmatpush2.msra.mxu0 0.0
      %980 = vmatprep.subr.mxu0 0.0
      %981 = vmatpush2.msra.mxu0 0.0
      %982 = vmatprep.subr.mxu0 0.0
      %983 = vmatpush2.msra.mxu0 0.0
      %984 = vmatprep.subr.mxu0 0.0
      %985 = vmatpush2.msra.mxu0 0.0
      %986 = vmatprep.subr.mxu0 0.0
      %987 = vmatpush2.msra.mxu0 0.0
      %988 = vmatprep.subr.mxu0 0.0
      %989 = vmatpush2.msra.mxu0 0.0
      %990 = vmatprep.subr.mxu0 0.0
      %991 = vmatpush2.msra.mxu0 0.0
      %992 = vmatprep.mubr.f32.mxu0 0.0
      %993 = vmatmul.mubr.f32.gmra.mxu0 %v369
      %v994 = vpop.f32.mrf.mxu0
      %v995 = vadd.f32 0.0, %v994
      %v996 = vpop.f32.mrf.mxu0
      %997 = vmatprep.mubr.f32.mxu0 0.0
      %998 = vmatmul.mubr.f32.gmra.mxu0 %v371
      %v999 = vpop.f32.mrf.mxu0
      %v1000 = vadd.f32 0.0, %v999
      %v1001 = vpop.f32.mrf.mxu0
      %1002 = vmatprep.mubr.f32.mxu0 0.0
      %1003 = vmatmul.mubr.f32.gmra.mxu0 %v373
      %v1004 = vpop.f32.mrf.mxu0
      %v1005 = vadd.f32 0.0, %v1004
      %v1006 = vpop.f32.mrf.mxu0
      %1007 = vmatprep.mubr.f32.mxu0 0.0
      %1008 = vmatmul.mubr.f32.gmra.mxu0 %v375
      %v1009 = vpop.f32.mrf.mxu0
      %v1010 = vadd.f32 0.0, %v1009
      %v1011 = vpop.f32.mrf.mxu0
      %1012 = vmatprep.mubr.f32.mxu0 0.0
      %1013 = vmatmul.mubr.f32.gmra.mxu0 %v377
      %v1014 = vpop.f32.mrf.mxu0
      %v1015 = vadd.f32 0.0, %v1014
      %v1016 = vpop.f32.mrf.mxu0
      %1017 = vmatprep.mubr.f32.mxu0 0.0
      %1018 = vmatmul.mubr.f32.gmra.mxu0 %v379
      %v1019 = vpop.f32.mrf.mxu0
      %v1020 = vadd.f32 0.0, %v1019
      %v1021 = vpop.f32.mrf.mxu0
      %1022 = vmatprep.mubr.f32.mxu0 0.0
      %1023 = vmatmul.mubr.f32.gmra.mxu0 %v381
      %v1024 = vpop.f32.mrf.mxu0
      %v1025 = vadd.f32 0.0, %v1024
      %v1026 = vpop.f32.mrf.mxu0
      %1027 = vmatprep.mubr.f32.mxu0 0.0
      %1028 = vmatmul.mubr.f32.gmra.mxu0 %v897
      %v1029 = vpop.f32.mrf.mxu0
      %v1030 = vadd.f32 0.0, %v1029
      %v1031 = vpop.f32.mrf.mxu0
      %1032 = vmatprep.mubr.f32.mxu0 0.0
      %1033 = vmatmul.mubr.f32.gmra.mxu0 %v899
      %v1034 = vpop.f32.mrf.mxu0
      %v1035 = vadd.f32 0.0, %v1034
      %v1036 = vpop.f32.mrf.mxu0
      %1037 = vmatprep.mubr.f32.mxu0 0.0
      %1038 = vmatmul.mubr.f32.gmra.mxu0 %v901
      %v1039 = vpop.f32.mrf.mxu0
      %v1040 = vadd.f32 0.0, %v1039
      %v1041 = vpop.f32.mrf.mxu0
      %1042 = vmatprep.mubr.f32.mxu0 0.0
      %1043 = vmatmul.mubr.f32.gmra.mxu0 %v903
      %v1044 = vpop.f32.mrf.mxu0
      %v1045 = vadd.f32 0.0, %v1044
      %v1046 = vpop.f32.mrf.mxu0
      %1047 = vmatprep.mubr.f32.mxu0 0.0
      %1048 = vmatmul.mubr.f32.gmra.mxu0 %v905
      %v1049 = vpop.f32.mrf.mxu0
      %v1050 = vadd.f32 0.0, %v1049
      %v1051 = vpop.f32.mrf.mxu0
      %1052 = vmatprep.mubr.f32.mxu0 0.0
      %1053 = vmatmul.mubr.f32.gmra.mxu0 %v907
      %v1054 = vpop.f32.mrf.mxu0
      %v1055 = vadd.f32 0.0, %v1054
      %v1056 = vpop.f32.mrf.mxu0
      %1057 = vmatprep.mubr.f32.mxu0 0.0
      %1058 = vmatmul.mubr.f32.gmra.mxu0 %v909
      %v1059 = vpop.f32.mrf.mxu0
      %v1060 = vadd.f32 0.0, %v1059
      %v1061 = vpop.f32.mrf.mxu0
      %1062 = vmatprep.mubr.f32.mxu0 0.0
      %1063 = vmatmul.mubr.f32.gmra.mxu0 %v404
      %v1064 = vpop.f32.mrf.mxu0
      %v1065 = vadd.f32 0.0, %v1064
      %v1066 = vpop.f32.mrf.mxu0
      %1067 = vmatprep.mubr.f32.mxu0 0.0
      %1068 = vmatmul.mubr.f32.gmra.mxu0 %v406
      %v1069 = vpop.f32.mrf.mxu0
      %v1070 = vadd.f32 0.0, %v1069
      %v1071 = vpop.f32.mrf.mxu0
      %1072 = vmatprep.mubr.f32.mxu0 0.0
      %1073 = vmatmul.mubr.f32.gmra.mxu0 %v408
      %v1074 = vpop.f32.mrf.mxu0
      %v1075 = vadd.f32 0.0, %v1074
      %v1076 = vpop.f32.mrf.mxu0
      %1077 = vmatprep.mubr.f32.mxu0 0.0
      %1078 = vmatmul.mubr.f32.gmra.mxu0 %v410
      %v1079 = vpop.f32.mrf.mxu0
      %v1080 = vadd.f32 0.0, %v1079
      %v1081 = vpop.f32.mrf.mxu0
      %1082 = vmatprep.mubr.f32.mxu0 0.0
      %1083 = vmatmul.mubr.f32.gmra.mxu0 %v412
      %v1084 = vpop.f32.mrf.mxu0
      %v1085 = vadd.f32 0.0, %v1084
      %v1086 = vpop.f32.mrf.mxu0
      %1087 = vmatprep.mubr.f32.mxu0 0.0
      %1088 = vmatmul.mubr.f32.gmra.mxu0 %v414
      %v1089 = vpop.f32.mrf.mxu0
      %v1090 = vadd.f32 0.0, %v1089
      %v1091 = vpop.f32.mrf.mxu0
      %1092 = vmatprep.mubr.f32.mxu0 0.0
      %1093 = vmatmul.mubr.f32.gmra.mxu0 %v416
      %v1094 = vpop.f32.mrf.mxu0
      %v1095 = vadd.f32 0.0, %v1094
      %v1096 = vpop.f32.mrf.mxu0
      %1097 = vmatprep.mubr.f32.mxu0 0.0
      %1098 = vmatmul.mubr.f32.gmra.mxu0 %v911
      %v1099 = vpop.f32.mrf.mxu0
      %v1100 = vadd.f32 0.0, %v1099
      %v1101 = vpop.f32.mrf.mxu0
      %1102 = vmatprep.mubr.f32.mxu0 0.0
      %1103 = vmatmul.mubr.f32.gmra.mxu0 %v913
      %v1104 = vpop.f32.mrf.mxu0
      %v1105 = vadd.f32 0.0, %v1104
      %v1106 = vpop.f32.mrf.mxu0
      %1107 = vmatprep.mubr.f32.mxu0 0.0
      %1108 = vmatmul.mubr.f32.gmra.mxu0 %v915
      %v1109 = vpop.f32.mrf.mxu0
      %v1110 = vadd.f32 0.0, %v1109
      %v1111 = vpop.f32.mrf.mxu0
      %1112 = vmatprep.mubr.f32.mxu0 0.0
      %1113 = vmatmul.mubr.f32.gmra.mxu0 %v917
      %v1114 = vpop.f32.mrf.mxu0
      %v1115 = vadd.f32 0.0, %v1114
      %v1116 = vpop.f32.mrf.mxu0
      %1117 = vmatprep.mubr.f32.mxu0 0.0
      %1118 = vmatmul.mubr.f32.gmra.mxu0 %v919
      %v1119 = vpop.f32.mrf.mxu0
      %v1120 = vadd.f32 0.0, %v1119
      %v1121 = vpop.f32.mrf.mxu0
      %1122 = vmatprep.mubr.f32.mxu0 0.0
      %1123 = vmatmul.mubr.f32.gmra.mxu0 %v921
      %v1124 = vpop.f32.mrf.mxu0
      %v1125 = vadd.f32 0.0, %v1124
      %v1126 = vpop.f32.mrf.mxu0
      %1127 = vmatprep.mubr.f32.mxu0 0.0
      %1128 = vmatmul.mubr.f32.gmra.mxu0 %v923
      %v1129 = vpop.f32.mrf.mxu0
      %v1130 = vadd.f32 0.0, %v1129
      %v1131 = vpop.f32.mrf.mxu0
      %1132 = vdwg.mxu0
      %v1133 = vadd.f32 %v725, %v995
      %v1134 = vadd.f32 %v730, %v1000
      %v1135 = vadd.f32 %v735, %v1005
      %v1136 = vadd.f32 %v740, %v1010
      %v1137 = vadd.f32 %v745, %v1015
      %v1138 = vadd.f32 %v750, %v1020
      %v1139 = vadd.f32 %v755, %v1025
      %v1140 = vadd.f32 %v760, %v1030
      %v1141 = vadd.f32 %v765, %v1035
      %v1142 = vadd.f32 %v770, %v1040
      %v1143 = vadd.f32 %v775, %v1045
      %v1144 = vadd.f32 %v780, %v1050
      %v1145 = vadd.f32 %v785, %v1055
      %v1146 = vadd.f32 %v790, %v1060
      %v1147 = vadd.f32 %v795, %v1065
      %v1148 = vadd.f32 %v800, %v1070
      %v1149 = vadd.f32 %v805, %v1075
      %v1150 = vadd.f32 %v810, %v1080
      %v1151 = vadd.f32 %v815, %v1085
      %v1152 = vadd.f32 %v820, %v1090
      %v1153 = vadd.f32 %v825, %v1095
      %v1154 = vadd.f32 %v830, %v1100
      %v1155 = vadd.f32 %v835, %v1105
      %v1156 = vadd.f32 %v840, %v1110
      %v1157 = vadd.f32 %v845, %v1115
      %v1158 = vadd.f32 %v850, %v1120
      %v1159 = vadd.f32 %v855, %v1125
      %v1160 = vadd.f32 %v860, %v1130
      %s1161 = scalar_lea.vmem %s1, 12
      %v1162 = vld [vmem:[%s1161] sm:$0xf]
      %v1163 = vsel %vm347, %v268, 0
      %v1165 = vsel %vm347, %v277, 0
      %v1168 = vsel %vm418, %v1162, 0
      %1170 = vmatprep.subr.mxu0 0.0
      %1171 = vmatpush1.msra.mxu0 0.0
      %1172 = vmatprep.subr.mxu0 0.0
      %1173 = vmatpush1.msra.mxu0 0.0
      %1174 = vmatprep.subr.mxu0 0.0
      %1175 = vmatpush1.msra.mxu0 0.0
      %1176 = vmatprep.subr.mxu0 0.0
      %1177 = vmatpush1.msra.mxu0 0.0
      %1178 = vmatprep.subr.mxu0 0.0
      %1179 = vmatpush1.msra.mxu0 0.0
      %1180 = vmatprep.subr.mxu0 0.0
      %1181 = vmatpush1.msra.mxu0 0.0
      %1182 = vmatprep.subr.mxu0 0.0
      %1183 = vmatpush1.msra.mxu0 0.0
      %1184 = vmatprep.subr.mxu0 0.0
      %1185 = vmatpush1.msra.mxu0 0.0
      %1186 = vmatprep.subr.mxu0 0.0
      %1187 = vmatpush1.msra.mxu0 0.0
      %1188 = vmatprep.subr.mxu0 0.0
      %1189 = vmatpush1.msra.mxu0 0.0
      %1190 = vmatprep.subr.mxu0 0.0
      %1191 = vmatpush1.msra.mxu0 0.0
      %1192 = vmatprep.subr.mxu0 0.0
      %1193 = vmatpush1.msra.mxu0 0.0
      %1194 = vmatprep.subr.mxu0 0.0
      %1195 = vmatpush1.msra.mxu0 0.0
      %1196 = vmatprep.subr.mxu0 0.0
      %1197 = vmatpush1.msra.mxu0 0.0
      %1198 = vmatprep.subr.mxu0 0.0
      %1199 = vmatpush1.msra.mxu0 0.0
      %1200 = vmatprep.subr.mxu0 0.0
      %1201 = vmatpush1.msra.mxu0 %v1168
      %1202 = vmatprep.subr.mxu0 0.0
      %1203 = vmatpush2.msra.mxu0 0.0
      %1204 = vmatprep.subr.mxu0 0.0
      %1205 = vmatpush2.msra.mxu0 0.0
      %1206 = vmatprep.subr.mxu0 0.0
      %1207 = vmatpush2.msra.mxu0 0.0
      %1208 = vmatprep.subr.mxu0 0.0
      %1209 = vmatpush2.msra.mxu0 0.0
      %1210 = vmatprep.subr.mxu0 0.0
      %1211 = vmatpush2.msra.mxu0 0.0
      %1212 = vmatprep.subr.mxu0 0.0
      %1213 = vmatpush2.msra.mxu0 0.0
      %1214 = vmatprep.subr.mxu0 0.0
      %1215 = vmatpush2.msra.mxu0 0.0
      %1216 = vmatprep.subr.mxu0 0.0
      %1217 = vmatpush2.msra.mxu0 0.0
      %1218 = vmatprep.subr.mxu0 0.0
      %1219 = vmatpush2.msra.mxu0 0.0
      %1220 = vmatprep.subr.mxu0 0.0
      %1221 = vmatpush2.msra.mxu0 0.0
      %1222 = vmatprep.subr.mxu0 0.0
      %1223 = vmatpush2.msra.mxu0 0.0
      %1224 = vmatprep.subr.mxu0 0.0
      %1225 = vmatpush2.msra.mxu0 0.0
      %1226 = vmatprep.subr.mxu0 0.0
      %1227 = vmatpush2.msra.mxu0 0.0
      %1228 = vmatprep.subr.mxu0 0.0
      %1229 = vmatpush2.msra.mxu0 0.0
      %1230 = vmatprep.subr.mxu0 0.0
      %1231 = vmatpush2.msra.mxu0 0.0
      %1232 = vmatprep.subr.mxu0 0.0
      %1233 = vmatpush2.msra.mxu0 0.0
      %1234 = vmatprep.mubr.f32.mxu0 0.0
      %1235 = vmatmul.mubr.f32.gmra.mxu0 %v641
      %v1236 = vpop.f32.mrf.mxu0
      %v1237 = vadd.f32 0.0, %v1236
      %v1238 = vpop.f32.mrf.mxu0
      %1239 = vmatprep.mubr.f32.mxu0 0.0
      %1240 = vmatmul.mubr.f32.gmra.mxu0 %v643
      %v1241 = vpop.f32.mrf.mxu0
      %v1242 = vadd.f32 0.0, %v1241
      %v1243 = vpop.f32.mrf.mxu0
      %1244 = vmatprep.mubr.f32.mxu0 0.0
      %1245 = vmatmul.mubr.f32.gmra.mxu0 %v645
      %v1246 = vpop.f32.mrf.mxu0
      %v1247 = vadd.f32 0.0, %v1246
      %v1248 = vpop.f32.mrf.mxu0
      %1249 = vmatprep.mubr.f32.mxu0 0.0
      %1250 = vmatmul.mubr.f32.gmra.mxu0 %v647
      %v1251 = vpop.f32.mrf.mxu0
      %v1252 = vadd.f32 0.0, %v1251
      %v1253 = vpop.f32.mrf.mxu0
      %1254 = vmatprep.mubr.f32.mxu0 0.0
      %1255 = vmatmul.mubr.f32.gmra.mxu0 %v649
      %v1256 = vpop.f32.mrf.mxu0
      %v1257 = vadd.f32 0.0, %v1256
      %v1258 = vpop.f32.mrf.mxu0
      %1259 = vmatprep.mubr.f32.mxu0 0.0
      %1260 = vmatmul.mubr.f32.gmra.mxu0 %v651
      %v1261 = vpop.f32.mrf.mxu0
      %v1262 = vadd.f32 0.0, %v1261
      %v1263 = vpop.f32.mrf.mxu0
      %1264 = vmatprep.mubr.f32.mxu0 0.0
      %1265 = vmatmul.mubr.f32.gmra.mxu0 %v653
      %v1266 = vpop.f32.mrf.mxu0
      %v1267 = vadd.f32 0.0, %v1266
      %v1268 = vpop.f32.mrf.mxu0
      %1269 = vmatprep.mubr.f32.mxu0 0.0
      %1270 = vmatmul.mubr.f32.gmra.mxu0 %v384
      %v1271 = vpop.f32.mrf.mxu0
      %v1272 = vadd.f32 0.0, %v1271
      %v1273 = vpop.f32.mrf.mxu0
      %1274 = vmatprep.mubr.f32.mxu0 0.0
      %1275 = vmatmul.mubr.f32.gmra.mxu0 %v387
      %v1276 = vpop.f32.mrf.mxu0
      %v1277 = vadd.f32 0.0, %v1276
      %v1278 = vpop.f32.mrf.mxu0
      %1279 = vmatprep.mubr.f32.mxu0 0.0
      %1280 = vmatmul.mubr.f32.gmra.mxu0 %v390
      %v1281 = vpop.f32.mrf.mxu0
      %v1282 = vadd.f32 0.0, %v1281
      %v1283 = vpop.f32.mrf.mxu0
      %1284 = vmatprep.mubr.f32.mxu0 0.0
      %1285 = vmatmul.mubr.f32.gmra.mxu0 %v393
      %v1286 = vpop.f32.mrf.mxu0
      %v1287 = vadd.f32 0.0, %v1286
      %v1288 = vpop.f32.mrf.mxu0
      %1289 = vmatprep.mubr.f32.mxu0 0.0
      %1290 = vmatmul.mubr.f32.gmra.mxu0 %v396
      %v1291 = vpop.f32.mrf.mxu0
      %v1292 = vadd.f32 0.0, %v1291
      %v1293 = vpop.f32.mrf.mxu0
      %1294 = vmatprep.mubr.f32.mxu0 0.0
      %1295 = vmatmul.mubr.f32.gmra.mxu0 %v399
      %v1296 = vpop.f32.mrf.mxu0
      %v1297 = vadd.f32 0.0, %v1296
      %v1298 = vpop.f32.mrf.mxu0
      %1299 = vmatprep.mubr.f32.mxu0 0.0
      %1300 = vmatmul.mubr.f32.gmra.mxu0 %v402
      %v1301 = vpop.f32.mrf.mxu0
      %v1302 = vadd.f32 0.0, %v1301
      %v1303 = vpop.f32.mrf.mxu0
      %1304 = vmatprep.mubr.f32.mxu0 0.0
      %1305 = vmatmul.mubr.f32.gmra.mxu0 %v629
      %v1306 = vpop.f32.mrf.mxu0
      %v1307 = vadd.f32 0.0, %v1306
      %v1308 = vpop.f32.mrf.mxu0
      %1309 = vmatprep.mubr.f32.mxu0 0.0
      %1310 = vmatmul.mubr.f32.gmra.mxu0 %v631
      %v1311 = vpop.f32.mrf.mxu0
      %v1312 = vadd.f32 0.0, %v1311
      %v1313 = vpop.f32.mrf.mxu0
      %1314 = vmatprep.mubr.f32.mxu0 0.0
      %1315 = vmatmul.mubr.f32.gmra.mxu0 %v633
      %v1316 = vpop.f32.mrf.mxu0
      %v1317 = vadd.f32 0.0, %v1316
      %v1318 = vpop.f32.mrf.mxu0
      %1319 = vmatprep.mubr.f32.mxu0 0.0
      %1320 = vmatmul.mubr.f32.gmra.mxu0 %v635
      %v1321 = vpop.f32.mrf.mxu0
      %v1322 = vadd.f32 0.0, %v1321
      %v1323 = vpop.f32.mrf.mxu0
      %1324 = vmatprep.mubr.f32.mxu0 0.0
      %1325 = vmatmul.mubr.f32.gmra.mxu0 %v637
      %v1326 = vpop.f32.mrf.mxu0
      %v1327 = vadd.f32 0.0, %v1326
      %v1328 = vpop.f32.mrf.mxu0
      %1329 = vmatprep.mubr.f32.mxu0 0.0
      %1330 = vmatmul.mubr.f32.gmra.mxu0 %v639
      %v1331 = vpop.f32.mrf.mxu0
      %v1332 = vadd.f32 0.0, %v1331
      %v1333 = vpop.f32.mrf.mxu0
      %1334 = vmatprep.mubr.f32.mxu0 0.0
      %1335 = vmatmul.mubr.f32.gmra.mxu0 %v1163
      %v1336 = vpop.f32.mrf.mxu0
      %v1337 = vadd.f32 0.0, %v1336
      %v1338 = vpop.f32.mrf.mxu0
      %1339 = vmatprep.mubr.f32.mxu0 0.0
      %1340 = vmatmul.mubr.f32.gmra.mxu0 %v352
      %v1341 = vpop.f32.mrf.mxu0
      %v1342 = vadd.f32 0.0, %v1341
      %v1343 = vpop.f32.mrf.mxu0
      %1344 = vmatprep.mubr.f32.mxu0 0.0
      %1345 = vmatmul.mubr.f32.gmra.mxu0 %v355
      %v1346 = vpop.f32.mrf.mxu0
      %v1347 = vadd.f32 0.0, %v1346
      %v1348 = vpop.f32.mrf.mxu0
      %1349 = vmatprep.mubr.f32.mxu0 0.0
      %1350 = vmatmul.mubr.f32.gmra.mxu0 %v358
      %v1351 = vpop.f32.mrf.mxu0
      %v1352 = vadd.f32 0.0, %v1351
      %v1353 = vpop.f32.mrf.mxu0
      %1354 = vmatprep.mubr.f32.mxu0 0.0
      %1355 = vmatmul.mubr.f32.gmra.mxu0 %v361
      %v1356 = vpop.f32.mrf.mxu0
      %v1357 = vadd.f32 0.0, %v1356
      %v1358 = vpop.f32.mrf.mxu0
      %1359 = vmatprep.mubr.f32.mxu0 0.0
      %1360 = vmatmul.mubr.f32.gmra.mxu0 %v364
      %v1361 = vpop.f32.mrf.mxu0
      %v1362 = vadd.f32 0.0, %v1361
      %v1363 = vpop.f32.mrf.mxu0
      %1364 = vmatprep.mubr.f32.mxu0 0.0
      %1365 = vmatmul.mubr.f32.gmra.mxu0 %v367
      %v1366 = vpop.f32.mrf.mxu0
      %v1367 = vadd.f32 0.0, %v1366
      %v1368 = vpop.f32.mrf.mxu0
      %1369 = vmatprep.mubr.f32.mxu0 0.0
      %1370 = vmatmul.mubr.f32.gmra.mxu0 %v1165
      %v1371 = vpop.f32.mrf.mxu0
      %v1372 = vadd.f32 0.0, %v1371
      %v1373 = vpop.f32.mrf.mxu0
      %1374 = vdwg.mxu0
      %v1375 = vadd.f32 %v1133, %v1237
      %v1376 = vadd.f32 %v1134, %v1242
      %v1377 = vadd.f32 %v1135, %v1247
      %v1378 = vadd.f32 %v1136, %v1252
      %v1379 = vadd.f32 %v1137, %v1257
      %v1380 = vadd.f32 %v1138, %v1262
      %v1381 = vadd.f32 %v1139, %v1267
      %v1382 = vadd.f32 %v1140, %v1272
      %v1383 = vadd.f32 %v1141, %v1277
      %v1384 = vadd.f32 %v1142, %v1282
      %v1385 = vadd.f32 %v1143, %v1287
      %v1386 = vadd.f32 %v1144, %v1292
      %v1387 = vadd.f32 %v1145, %v1297
      %v1388 = vadd.f32 %v1146, %v1302
      %v1389 = vadd.f32 %v1147, %v1307
      %v1390 = vadd.f32 %v1148, %v1312
      %v1391 = vadd.f32 %v1149, %v1317
      %v1392 = vadd.f32 %v1150, %v1322
      %v1393 = vadd.f32 %v1151, %v1327
      %v1394 = vadd.f32 %v1152, %v1332
      %v1395 = vadd.f32 %v1153, %v1337
      %v1396 = vadd.f32 %v1154, %v1342
      %v1397 = vadd.f32 %v1155, %v1347
      %v1398 = vadd.f32 %v1156, %v1352
      %v1399 = vadd.f32 %v1157, %v1357
      %v1400 = vadd.f32 %v1158, %v1362
      %v1401 = vadd.f32 %v1159, %v1367
      %v1402 = vadd.f32 %v1160, %v1372
      %v1404 = vrot.slane %v269, 1
      %v1405 = vsel %vm306, %v320, %v1404
      %s1406 = scalar_lea.vmem %s1, 16
      %v1407 = vld [vmem:[%s1406] sm:$0xf]
      %v1408 = vsel %vm347, %v1405, 0
      %v1411 = vsel %vm418, %v1407, 0
      %1413 = vmatprep.subr.mxu0 0.0
      %1414 = vmatpush1.msra.mxu0 0.0
      %1415 = vmatprep.subr.mxu0 0.0
      %1416 = vmatpush1.msra.mxu0 0.0
      %1417 = vmatprep.subr.mxu0 0.0
      %1418 = vmatpush1.msra.mxu0 0.0
      %1419 = vmatprep.subr.mxu0 0.0
      %1420 = vmatpush1.msra.mxu0 0.0
      %1421 = vmatprep.subr.mxu0 0.0
      %1422 = vmatpush1.msra.mxu0 0.0
      %1423 = vmatprep.subr.mxu0 0.0
      %1424 = vmatpush1.msra.mxu0 0.0
      %1425 = vmatprep.subr.mxu0 0.0
      %1426 = vmatpush1.msra.mxu0 0.0
      %1427 = vmatprep.subr.mxu0 0.0
      %1428 = vmatpush1.msra.mxu0 0.0
      %1429 = vmatprep.subr.mxu0 0.0
      %1430 = vmatpush1.msra.mxu0 0.0
      %1431 = vmatprep.subr.mxu0 0.0
      %1432 = vmatpush1.msra.mxu0 0.0
      %1433 = vmatprep.subr.mxu0 0.0
      %1434 = vmatpush1.msra.mxu0 0.0
      %1435 = vmatprep.subr.mxu0 0.0
      %1436 = vmatpush1.msra.mxu0 0.0
      %1437 = vmatprep.subr.mxu0 0.0
      %1438 = vmatpush1.msra.mxu0 0.0
      %1439 = vmatprep.subr.mxu0 0.0
      %1440 = vmatpush1.msra.mxu0 0.0
      %1441 = vmatprep.subr.mxu0 0.0
      %1442 = vmatpush1.msra.mxu0 0.0
      %1443 = vmatprep.subr.mxu0 0.0
      %1444 = vmatpush1.msra.mxu0 %v1411
      %1445 = vmatprep.subr.mxu0 0.0
      %1446 = vmatpush2.msra.mxu0 0.0
      %1447 = vmatprep.subr.mxu0 0.0
      %1448 = vmatpush2.msra.mxu0 0.0
      %1449 = vmatprep.subr.mxu0 0.0
      %1450 = vmatpush2.msra.mxu0 0.0
      %1451 = vmatprep.subr.mxu0 0.0
      %1452 = vmatpush2.msra.mxu0 0.0
      %1453 = vmatprep.subr.mxu0 0.0
      %1454 = vmatpush2.msra.mxu0 0.0
      %1455 = vmatprep.subr.mxu0 0.0
      %1456 = vmatpush2.msra.mxu0 0.0
      %1457 = vmatprep.subr.mxu0 0.0
      %1458 = vmatpush2.msra.mxu0 0.0
      %1459 = vmatprep.subr.mxu0 0.0
      %1460 = vmatpush2.msra.mxu0 0.0
      %1461 = vmatprep.subr.mxu0 0.0
      %1462 = vmatpush2.msra.mxu0 0.0
      %1463 = vmatprep.subr.mxu0 0.0
      %1464 = vmatpush2.msra.mxu0 0.0
      %1465 = vmatprep.subr.mxu0 0.0
      %1466 = vmatpush2.msra.mxu0 0.0
      %1467 = vmatprep.subr.mxu0 0.0
      %1468 = vmatpush2.msra.mxu0 0.0
      %1469 = vmatprep.subr.mxu0 0.0
      %1470 = vmatpush2.msra.mxu0 0.0
      %1471 = vmatprep.subr.mxu0 0.0
      %1472 = vmatpush2.msra.mxu0 0.0
      %1473 = vmatprep.subr.mxu0 0.0
      %1474 = vmatpush2.msra.mxu0 0.0
      %1475 = vmatprep.subr.mxu0 0.0
      %1476 = vmatpush2.msra.mxu0 0.0
      %1477 = vmatprep.mubr.f32.mxu0 0.0
      %1478 = vmatmul.mubr.f32.gmra.mxu0 %v384
      %v1479 = vpop.f32.mrf.mxu0
      %v1480 = vadd.f32 0.0, %v1479
      %v1481 = vpop.f32.mrf.mxu0
      %1482 = vmatprep.mubr.f32.mxu0 0.0
      %1483 = vmatmul.mubr.f32.gmra.mxu0 %v387
      %v1484 = vpop.f32.mrf.mxu0
      %v1485 = vadd.f32 0.0, %v1484
      %v1486 = vpop.f32.mrf.mxu0
      %1487 = vmatprep.mubr.f32.mxu0 0.0
      %1488 = vmatmul.mubr.f32.gmra.mxu0 %v390
      %v1489 = vpop.f32.mrf.mxu0
      %v1490 = vadd.f32 0.0, %v1489
      %v1491 = vpop.f32.mrf.mxu0
      %1492 = vmatprep.mubr.f32.mxu0 0.0
      %1493 = vmatmul.mubr.f32.gmra.mxu0 %v393
      %v1494 = vpop.f32.mrf.mxu0
      %v1495 = vadd.f32 0.0, %v1494
      %v1496 = vpop.f32.mrf.mxu0
      %1497 = vmatprep.mubr.f32.mxu0 0.0
      %1498 = vmatmul.mubr.f32.gmra.mxu0 %v396
      %v1499 = vpop.f32.mrf.mxu0
      %v1500 = vadd.f32 0.0, %v1499
      %v1501 = vpop.f32.mrf.mxu0
      %1502 = vmatprep.mubr.f32.mxu0 0.0
      %1503 = vmatmul.mubr.f32.gmra.mxu0 %v399
      %v1504 = vpop.f32.mrf.mxu0
      %v1505 = vadd.f32 0.0, %v1504
      %v1506 = vpop.f32.mrf.mxu0
      %1507 = vmatprep.mubr.f32.mxu0 0.0
      %1508 = vmatmul.mubr.f32.gmra.mxu0 %v402
      %v1509 = vpop.f32.mrf.mxu0
      %v1510 = vadd.f32 0.0, %v1509
      %v1511 = vpop.f32.mrf.mxu0
      %1512 = vmatprep.mubr.f32.mxu0 0.0
      %1513 = vmatmul.mubr.f32.gmra.mxu0 %v404
      %v1514 = vpop.f32.mrf.mxu0
      %v1515 = vadd.f32 0.0, %v1514
      %v1516 = vpop.f32.mrf.mxu0
      %1517 = vmatprep.mubr.f32.mxu0 0.0
      %1518 = vmatmul.mubr.f32.gmra.mxu0 %v406
      %v1519 = vpop.f32.mrf.mxu0
      %v1520 = vadd.f32 0.0, %v1519
      %v1521 = vpop.f32.mrf.mxu0
      %1522 = vmatprep.mubr.f32.mxu0 0.0
      %1523 = vmatmul.mubr.f32.gmra.mxu0 %v408
      %v1524 = vpop.f32.mrf.mxu0
      %v1525 = vadd.f32 0.0, %v1524
      %v1526 = vpop.f32.mrf.mxu0
      %1527 = vmatprep.mubr.f32.mxu0 0.0
      %1528 = vmatmul.mubr.f32.gmra.mxu0 %v410
      %v1529 = vpop.f32.mrf.mxu0
      %v1530 = vadd.f32 0.0, %v1529
      %v1531 = vpop.f32.mrf.mxu0
      %1532 = vmatprep.mubr.f32.mxu0 0.0
      %1533 = vmatmul.mubr.f32.gmra.mxu0 %v412
      %v1534 = vpop.f32.mrf.mxu0
      %v1535 = vadd.f32 0.0, %v1534
      %v1536 = vpop.f32.mrf.mxu0
      %1537 = vmatprep.mubr.f32.mxu0 0.0
      %1538 = vmatmul.mubr.f32.gmra.mxu0 %v414
      %v1539 = vpop.f32.mrf.mxu0
      %v1540 = vadd.f32 0.0, %v1539
      %v1541 = vpop.f32.mrf.mxu0
      %1542 = vmatprep.mubr.f32.mxu0 0.0
      %1543 = vmatmul.mubr.f32.gmra.mxu0 %v416
      %v1544 = vpop.f32.mrf.mxu0
      %v1545 = vadd.f32 0.0, %v1544
      %v1546 = vpop.f32.mrf.mxu0
      %1547 = vmatprep.mubr.f32.mxu0 0.0
      %1548 = vmatmul.mubr.f32.gmra.mxu0 %v352
      %v1549 = vpop.f32.mrf.mxu0
      %v1550 = vadd.f32 0.0, %v1549
      %v1551 = vpop.f32.mrf.mxu0
      %1552 = vmatprep.mubr.f32.mxu0 0.0
      %1553 = vmatmul.mubr.f32.gmra.mxu0 %v355
      %v1554 = vpop.f32.mrf.mxu0
      %v1555 = vadd.f32 0.0, %v1554
      %v1556 = vpop.f32.mrf.mxu0
      %1557 = vmatprep.mubr.f32.mxu0 0.0
      %1558 = vmatmul.mubr.f32.gmra.mxu0 %v358
      %v1559 = vpop.f32.mrf.mxu0
      %v1560 = vadd.f32 0.0, %v1559
      %v1561 = vpop.f32.mrf.mxu0
      %1562 = vmatprep.mubr.f32.mxu0 0.0
      %1563 = vmatmul.mubr.f32.gmra.mxu0 %v361
      %v1564 = vpop.f32.mrf.mxu0
      %v1565 = vadd.f32 0.0, %v1564
      %v1566 = vpop.f32.mrf.mxu0
      %1567 = vmatprep.mubr.f32.mxu0 0.0
      %1568 = vmatmul.mubr.f32.gmra.mxu0 %v364
      %v1569 = vpop.f32.mrf.mxu0
      %v1570 = vadd.f32 0.0, %v1569
      %v1571 = vpop.f32.mrf.mxu0
      %1572 = vmatprep.mubr.f32.mxu0 0.0
      %1573 = vmatmul.mubr.f32.gmra.mxu0 %v367
      %v1574 = vpop.f32.mrf.mxu0
      %v1575 = vadd.f32 0.0, %v1574
      %v1576 = vpop.f32.mrf.mxu0
      %1577 = vmatprep.mubr.f32.mxu0 0.0
      %1578 = vmatmul.mubr.f32.gmra.mxu0 %v1165
      %v1579 = vpop.f32.mrf.mxu0
      %v1580 = vadd.f32 0.0, %v1579
      %v1581 = vpop.f32.mrf.mxu0
      %1582 = vmatprep.mubr.f32.mxu0 0.0
      %1583 = vmatmul.mubr.f32.gmra.mxu0 %v371
      %v1584 = vpop.f32.mrf.mxu0
      %v1585 = vadd.f32 0.0, %v1584
      %v1586 = vpop.f32.mrf.mxu0
      %1587 = vmatprep.mubr.f32.mxu0 0.0
      %1588 = vmatmul.mubr.f32.gmra.mxu0 %v373
      %v1589 = vpop.f32.mrf.mxu0
      %v1590 = vadd.f32 0.0, %v1589
      %v1591 = vpop.f32.mrf.mxu0
      %1592 = vmatprep.mubr.f32.mxu0 0.0
      %1593 = vmatmul.mubr.f32.gmra.mxu0 %v375
      %v1594 = vpop.f32.mrf.mxu0
      %v1595 = vadd.f32 0.0, %v1594
      %v1596 = vpop.f32.mrf.mxu0
      %1597 = vmatprep.mubr.f32.mxu0 0.0
      %1598 = vmatmul.mubr.f32.gmra.mxu0 %v377
      %v1599 = vpop.f32.mrf.mxu0
      %v1600 = vadd.f32 0.0, %v1599
      %v1601 = vpop.f32.mrf.mxu0
      %1602 = vmatprep.mubr.f32.mxu0 0.0
      %1603 = vmatmul.mubr.f32.gmra.mxu0 %v379
      %v1604 = vpop.f32.mrf.mxu0
      %v1605 = vadd.f32 0.0, %v1604
      %v1606 = vpop.f32.mrf.mxu0
      %1607 = vmatprep.mubr.f32.mxu0 0.0
      %1608 = vmatmul.mubr.f32.gmra.mxu0 %v381
      %v1609 = vpop.f32.mrf.mxu0
      %v1610 = vadd.f32 0.0, %v1609
      %v1611 = vpop.f32.mrf.mxu0
      %1612 = vmatprep.mubr.f32.mxu0 0.0
      %1613 = vmatmul.mubr.f32.gmra.mxu0 %v1408
      %v1614 = vpop.f32.mrf.mxu0
      %v1615 = vadd.f32 0.0, %v1614
      %v1616 = vpop.f32.mrf.mxu0
      %1617 = vdwg.mxu0
      %v1618 = vadd.f32 %v1375, %v1480
      %v1619 = vadd.f32 %v1376, %v1485
      %v1620 = vadd.f32 %v1377, %v1490
      %v1621 = vadd.f32 %v1378, %v1495
      %v1622 = vadd.f32 %v1379, %v1500
      %v1623 = vadd.f32 %v1380, %v1505
      %v1624 = vadd.f32 %v1381, %v1510
      %v1625 = vadd.f32 %v1382, %v1515
      %v1626 = vadd.f32 %v1383, %v1520
      %v1627 = vadd.f32 %v1384, %v1525
      %v1628 = vadd.f32 %v1385, %v1530
      %v1629 = vadd.f32 %v1386, %v1535
      %v1630 = vadd.f32 %v1387, %v1540
      %v1631 = vadd.f32 %v1388, %v1545
      %v1632 = vadd.f32 %v1389, %v1550
      %v1633 = vadd.f32 %v1390, %v1555
      %v1634 = vadd.f32 %v1391, %v1560
      %v1635 = vadd.f32 %v1392, %v1565
      %v1636 = vadd.f32 %v1393, %v1570
      %v1637 = vadd.f32 %v1394, %v1575
      %v1638 = vadd.f32 %v1395, %v1580
      %v1639 = vadd.f32 %v1396, %v1585
      %v1640 = vadd.f32 %v1397, %v1590
      %v1641 = vadd.f32 %v1398, %v1595
      %v1642 = vadd.f32 %v1399, %v1600
      %v1643 = vadd.f32 %v1400, %v1605
      %v1644 = vadd.f32 %v1401, %v1610
      %v1645 = vadd.f32 %v1402, %v1615
      %v1647 = vrot.slane %v278, 1
      %v1648 = vsel %vm306, %v877, %v1647
      %s1649 = scalar_lea.vmem %s1, 20
      %v1650 = vld [vmem:[%s1649] sm:$0xf]
      %v1651 = vsel %vm347, %v1648, 0
      %v1654 = vsel %vm418, %v1650, 0
      %1656 = vmatprep.subr.mxu0 0.0
      %1657 = vmatpush1.msra.mxu0 0.0
      %1658 = vmatprep.subr.mxu0 0.0
      %1659 = vmatpush1.msra.mxu0 0.0
      %1660 = vmatprep.subr.mxu0 0.0
      %1661 = vmatpush1.msra.mxu0 0.0
      %1662 = vmatprep.subr.mxu0 0.0
      %1663 = vmatpush1.msra.mxu0 0.0
      %1664 = vmatprep.subr.mxu0 0.0
      %1665 = vmatpush1.msra.mxu0 0.0
      %1666 = vmatprep.subr.mxu0 0.0
      %1667 = vmatpush1.msra.mxu0 0.0
      %1668 = vmatprep.subr.mxu0 0.0
      %1669 = vmatpush1.msra.mxu0 0.0
      %1670 = vmatprep.subr.mxu0 0.0
      %1671 = vmatpush1.msra.mxu0 0.0
      %1672 = vmatprep.subr.mxu0 0.0
      %1673 = vmatpush1.msra.mxu0 0.0
      %1674 = vmatprep.subr.mxu0 0.0
      %1675 = vmatpush1.msra.mxu0 0.0
      %1676 = vmatprep.subr.mxu0 0.0
      %1677 = vmatpush1.msra.mxu0 0.0
      %1678 = vmatprep.subr.mxu0 0.0
      %1679 = vmatpush1.msra.mxu0 0.0
      %1680 = vmatprep.subr.mxu0 0.0
      %1681 = vmatpush1.msra.mxu0 0.0
      %1682 = vmatprep.subr.mxu0 0.0
      %1683 = vmatpush1.msra.mxu0 0.0
      %1684 = vmatprep.subr.mxu0 0.0
      %1685 = vmatpush1.msra.mxu0 0.0
      %1686 = vmatprep.subr.mxu0 0.0
      %1687 = vmatpush1.msra.mxu0 %v1654
      %1688 = vmatprep.subr.mxu0 0.0
      %1689 = vmatpush2.msra.mxu0 0.0
      %1690 = vmatprep.subr.mxu0 0.0
      %1691 = vmatpush2.msra.mxu0 0.0
      %1692 = vmatprep.subr.mxu0 0.0
      %1693 = vmatpush2.msra.mxu0 0.0
      %1694 = vmatprep.subr.mxu0 0.0
      %1695 = vmatpush2.msra.mxu0 0.0
      %1696 = vmatprep.subr.mxu0 0.0
      %1697 = vmatpush2.msra.mxu0 0.0
      %1698 = vmatprep.subr.mxu0 0.0
      %1699 = vmatpush2.msra.mxu0 0.0
      %1700 = vmatprep.subr.mxu0 0.0
      %1701 = vmatpush2.msra.mxu0 0.0
      %1702 = vmatprep.subr.mxu0 0.0
      %1703 = vmatpush2.msra.mxu0 0.0
      %1704 = vmatprep.subr.mxu0 0.0
      %1705 = vmatpush2.msra.mxu0 0.0
      %1706 = vmatprep.subr.mxu0 0.0
      %1707 = vmatpush2.msra.mxu0 0.0
      %1708 = vmatprep.subr.mxu0 0.0
      %1709 = vmatpush2.msra.mxu0 0.0
      %1710 = vmatprep.subr.mxu0 0.0
      %1711 = vmatpush2.msra.mxu0 0.0
      %1712 = vmatprep.subr.mxu0 0.0
      %1713 = vmatpush2.msra.mxu0 0.0
      %1714 = vmatprep.subr.mxu0 0.0
      %1715 = vmatpush2.msra.mxu0 0.0
      %1716 = vmatprep.subr.mxu0 0.0
      %1717 = vmatpush2.msra.mxu0 0.0
      %1718 = vmatprep.subr.mxu0 0.0
      %1719 = vmatpush2.msra.mxu0 0.0
      %1720 = vmatprep.mubr.f32.mxu0 0.0
      %1721 = vmatmul.mubr.f32.gmra.mxu0 %v404
      %v1722 = vpop.f32.mrf.mxu0
      %v1723 = vadd.f32 0.0, %v1722
      %v1724 = vpop.f32.mrf.mxu0
      %1725 = vmatprep.mubr.f32.mxu0 0.0
      %1726 = vmatmul.mubr.f32.gmra.mxu0 %v406
      %v1727 = vpop.f32.mrf.mxu0
      %v1728 = vadd.f32 0.0, %v1727
      %v1729 = vpop.f32.mrf.mxu0
      %1730 = vmatprep.mubr.f32.mxu0 0.0
      %1731 = vmatmul.mubr.f32.gmra.mxu0 %v408
      %v1732 = vpop.f32.mrf.mxu0
      %v1733 = vadd.f32 0.0, %v1732
      %v1734 = vpop.f32.mrf.mxu0
      %1735 = vmatprep.mubr.f32.mxu0 0.0
      %1736 = vmatmul.mubr.f32.gmra.mxu0 %v410
      %v1737 = vpop.f32.mrf.mxu0
      %v1738 = vadd.f32 0.0, %v1737
      %v1739 = vpop.f32.mrf.mxu0
      %1740 = vmatprep.mubr.f32.mxu0 0.0
      %1741 = vmatmul.mubr.f32.gmra.mxu0 %v412
      %v1742 = vpop.f32.mrf.mxu0
      %v1743 = vadd.f32 0.0, %v1742
      %v1744 = vpop.f32.mrf.mxu0
      %1745 = vmatprep.mubr.f32.mxu0 0.0
      %1746 = vmatmul.mubr.f32.gmra.mxu0 %v414
      %v1747 = vpop.f32.mrf.mxu0
      %v1748 = vadd.f32 0.0, %v1747
      %v1749 = vpop.f32.mrf.mxu0
      %1750 = vmatprep.mubr.f32.mxu0 0.0
      %1751 = vmatmul.mubr.f32.gmra.mxu0 %v416
      %v1752 = vpop.f32.mrf.mxu0
      %v1753 = vadd.f32 0.0, %v1752
      %v1754 = vpop.f32.mrf.mxu0
      %1755 = vmatprep.mubr.f32.mxu0 0.0
      %1756 = vmatmul.mubr.f32.gmra.mxu0 %v911
      %v1757 = vpop.f32.mrf.mxu0
      %v1758 = vadd.f32 0.0, %v1757
      %v1759 = vpop.f32.mrf.mxu0
      %1760 = vmatprep.mubr.f32.mxu0 0.0
      %1761 = vmatmul.mubr.f32.gmra.mxu0 %v913
      %v1762 = vpop.f32.mrf.mxu0
      %v1763 = vadd.f32 0.0, %v1762
      %v1764 = vpop.f32.mrf.mxu0
      %1765 = vmatprep.mubr.f32.mxu0 0.0
      %1766 = vmatmul.mubr.f32.gmra.mxu0 %v915
      %v1767 = vpop.f32.mrf.mxu0
      %v1768 = vadd.f32 0.0, %v1767
      %v1769 = vpop.f32.mrf.mxu0
      %1770 = vmatprep.mubr.f32.mxu0 0.0
      %1771 = vmatmul.mubr.f32.gmra.mxu0 %v917
      %v1772 = vpop.f32.mrf.mxu0
      %v1773 = vadd.f32 0.0, %v1772
      %v1774 = vpop.f32.mrf.mxu0
      %1775 = vmatprep.mubr.f32.mxu0 0.0
      %1776 = vmatmul.mubr.f32.gmra.mxu0 %v919
      %v1777 = vpop.f32.mrf.mxu0
      %v1778 = vadd.f32 0.0, %v1777
      %v1779 = vpop.f32.mrf.mxu0
      %1780 = vmatprep.mubr.f32.mxu0 0.0
      %1781 = vmatmul.mubr.f32.gmra.mxu0 %v921
      %v1782 = vpop.f32.mrf.mxu0
      %v1783 = vadd.f32 0.0, %v1782
      %v1784 = vpop.f32.mrf.mxu0
      %1785 = vmatprep.mubr.f32.mxu0 0.0
      %1786 = vmatmul.mubr.f32.gmra.mxu0 %v923
      %v1787 = vpop.f32.mrf.mxu0
      %v1788 = vadd.f32 0.0, %v1787
      %v1789 = vpop.f32.mrf.mxu0
      %1790 = vmatprep.mubr.f32.mxu0 0.0
      %1791 = vmatmul.mubr.f32.gmra.mxu0 %v371
      %v1792 = vpop.f32.mrf.mxu0
      %v1793 = vadd.f32 0.0, %v1792
      %v1794 = vpop.f32.mrf.mxu0
      %1795 = vmatprep.mubr.f32.mxu0 0.0
      %1796 = vmatmul.mubr.f32.gmra.mxu0 %v373
      %v1797 = vpop.f32.mrf.mxu0
      %v1798 = vadd.f32 0.0, %v1797
      %v1799 = vpop.f32.mrf.mxu0
      %1800 = vmatprep.mubr.f32.mxu0 0.0
      %1801 = vmatmul.mubr.f32.gmra.mxu0 %v375
      %v1802 = vpop.f32.mrf.mxu0
      %v1803 = vadd.f32 0.0, %v1802
      %v1804 = vpop.f32.mrf.mxu0
      %1805 = vmatprep.mubr.f32.mxu0 0.0
      %1806 = vmatmul.mubr.f32.gmra.mxu0 %v377
      %v1807 = vpop.f32.mrf.mxu0
      %v1808 = vadd.f32 0.0, %v1807
      %v1809 = vpop.f32.mrf.mxu0
      %1810 = vmatprep.mubr.f32.mxu0 0.0
      %1811 = vmatmul.mubr.f32.gmra.mxu0 %v379
      %v1812 = vpop.f32.mrf.mxu0
      %v1813 = vadd.f32 0.0, %v1812
      %v1814 = vpop.f32.mrf.mxu0
      %1815 = vmatprep.mubr.f32.mxu0 0.0
      %1816 = vmatmul.mubr.f32.gmra.mxu0 %v381
      %v1817 = vpop.f32.mrf.mxu0
      %v1818 = vadd.f32 0.0, %v1817
      %v1819 = vpop.f32.mrf.mxu0
      %1820 = vmatprep.mubr.f32.mxu0 0.0
      %1821 = vmatmul.mubr.f32.gmra.mxu0 %v1408
      %v1822 = vpop.f32.mrf.mxu0
      %v1823 = vadd.f32 0.0, %v1822
      %v1824 = vpop.f32.mrf.mxu0
      %1825 = vmatprep.mubr.f32.mxu0 0.0
      %1826 = vmatmul.mubr.f32.gmra.mxu0 %v899
      %v1827 = vpop.f32.mrf.mxu0
      %v1828 = vadd.f32 0.0, %v1827
      %v1829 = vpop.f32.mrf.mxu0
      %1830 = vmatprep.mubr.f32.mxu0 0.0
      %1831 = vmatmul.mubr.f32.gmra.mxu0 %v901
      %v1832 = vpop.f32.mrf.mxu0
      %v1833 = vadd.f32 0.0, %v1832
      %v1834 = vpop.f32.mrf.mxu0
      %1835 = vmatprep.mubr.f32.mxu0 0.0
      %1836 = vmatmul.mubr.f32.gmra.mxu0 %v903
      %v1837 = vpop.f32.mrf.mxu0
      %v1838 = vadd.f32 0.0, %v1837
      %v1839 = vpop.f32.mrf.mxu0
      %1840 = vmatprep.mubr.f32.mxu0 0.0
      %1841 = vmatmul.mubr.f32.gmra.mxu0 %v905
      %v1842 = vpop.f32.mrf.mxu0
      %v1843 = vadd.f32 0.0, %v1842
      %v1844 = vpop.f32.mrf.mxu0
      %1845 = vmatprep.mubr.f32.mxu0 0.0
      %1846 = vmatmul.mubr.f32.gmra.mxu0 %v907
      %v1847 = vpop.f32.mrf.mxu0
      %v1848 = vadd.f32 0.0, %v1847
      %v1849 = vpop.f32.mrf.mxu0
      %1850 = vmatprep.mubr.f32.mxu0 0.0
      %1851 = vmatmul.mubr.f32.gmra.mxu0 %v909
      %v1852 = vpop.f32.mrf.mxu0
      %v1853 = vadd.f32 0.0, %v1852
      %v1854 = vpop.f32.mrf.mxu0
      %1855 = vmatprep.mubr.f32.mxu0 0.0
      %1856 = vmatmul.mubr.f32.gmra.mxu0 %v1651
      %v1857 = vpop.f32.mrf.mxu0
      %v1858 = vadd.f32 0.0, %v1857
      %v1859 = vpop.f32.mrf.mxu0
      %1860 = vdwg.mxu0
      %v1861 = vadd.f32 %v1618, %v1723
      %v1862 = vadd.f32 %v1619, %v1728
      %v1863 = vadd.f32 %v1620, %v1733
      %v1864 = vadd.f32 %v1621, %v1738
      %v1865 = vadd.f32 %v1622, %v1743
      %v1866 = vadd.f32 %v1623, %v1748
      %v1867 = vadd.f32 %v1624, %v1753
      %v1868 = vadd.f32 %v1625, %v1758
      %v1869 = vadd.f32 %v1626, %v1763
      %v1870 = vadd.f32 %v1627, %v1768
      %v1871 = vadd.f32 %v1628, %v1773
      %v1872 = vadd.f32 %v1629, %v1778
      %v1873 = vadd.f32 %v1630, %v1783
      %v1874 = vadd.f32 %v1631, %v1788
      %v1875 = vadd.f32 %v1632, %v1793
      %v1876 = vadd.f32 %v1633, %v1798
      %v1877 = vadd.f32 %v1634, %v1803
      %v1878 = vadd.f32 %v1635, %v1808
      %v1879 = vadd.f32 %v1636, %v1813
      %v1880 = vadd.f32 %v1637, %v1818
      %v1881 = vadd.f32 %v1638, %v1823
      %v1882 = vadd.f32 %v1639, %v1828
      %v1883 = vadd.f32 %v1640, %v1833
      %v1884 = vadd.f32 %v1641, %v1838
      %v1885 = vadd.f32 %v1642, %v1843
      %v1886 = vadd.f32 %v1643, %v1848
      %v1887 = vadd.f32 %v1644, %v1853
      %v1888 = vadd.f32 %v1645, %v1858
      %s1889 = scalar_lea.vmem %s1, 24
      %v1890 = vld [vmem:[%s1889] sm:$0xf]
      %v1891 = vsel %vm347, %v286, 0
      %v1893 = vsel %vm347, %v295, 0
      %v1896 = vsel %vm418, %v1890, 0
      %1898 = vmatprep.subr.mxu0 0.0
      %1899 = vmatpush1.msra.mxu0 0.0
      %1900 = vmatprep.subr.mxu0 0.0
      %1901 = vmatpush1.msra.mxu0 0.0
      %1902 = vmatprep.subr.mxu0 0.0
      %1903 = vmatpush1.msra.mxu0 0.0
      %1904 = vmatprep.subr.mxu0 0.0
      %1905 = vmatpush1.msra.mxu0 0.0
      %1906 = vmatprep.subr.mxu0 0.0
      %1907 = vmatpush1.msra.mxu0 0.0
      %1908 = vmatprep.subr.mxu0 0.0
      %1909 = vmatpush1.msra.mxu0 0.0
      %1910 = vmatprep.subr.mxu0 0.0
      %1911 = vmatpush1.msra.mxu0 0.0
      %1912 = vmatprep.subr.mxu0 0.0
      %1913 = vmatpush1.msra.mxu0 0.0
      %1914 = vmatprep.subr.mxu0 0.0
      %1915 = vmatpush1.msra.mxu0 0.0
      %1916 = vmatprep.subr.mxu0 0.0
      %1917 = vmatpush1.msra.mxu0 0.0
      %1918 = vmatprep.subr.mxu0 0.0
      %1919 = vmatpush1.msra.mxu0 0.0
      %1920 = vmatprep.subr.mxu0 0.0
      %1921 = vmatpush1.msra.mxu0 0.0
      %1922 = vmatprep.subr.mxu0 0.0
      %1923 = vmatpush1.msra.mxu0 0.0
      %1924 = vmatprep.subr.mxu0 0.0
      %1925 = vmatpush1.msra.mxu0 0.0
      %1926 = vmatprep.subr.mxu0 0.0
      %1927 = vmatpush1.msra.mxu0 0.0
      %1928 = vmatprep.subr.mxu0 0.0
      %1929 = vmatpush1.msra.mxu0 %v1896
      %1930 = vmatprep.subr.mxu0 0.0
      %1931 = vmatpush2.msra.mxu0 0.0
      %1932 = vmatprep.subr.mxu0 0.0
      %1933 = vmatpush2.msra.mxu0 0.0
      %1934 = vmatprep.subr.mxu0 0.0
      %1935 = vmatpush2.msra.mxu0 0.0
      %1936 = vmatprep.subr.mxu0 0.0
      %1937 = vmatpush2.msra.mxu0 0.0
      %1938 = vmatprep.subr.mxu0 0.0
      %1939 = vmatpush2.msra.mxu0 0.0
      %1940 = vmatprep.subr.mxu0 0.0
      %1941 = vmatpush2.msra.mxu0 0.0
      %1942 = vmatprep.subr.mxu0 0.0
      %1943 = vmatpush2.msra.mxu0 0.0
      %1944 = vmatprep.subr.mxu0 0.0
      %1945 = vmatpush2.msra.mxu0 0.0
      %1946 = vmatprep.subr.mxu0 0.0
      %1947 = vmatpush2.msra.mxu0 0.0
      %1948 = vmatprep.subr.mxu0 0.0
      %1949 = vmatpush2.msra.mxu0 0.0
      %1950 = vmatprep.subr.mxu0 0.0
      %1951 = vmatpush2.msra.mxu0 0.0
      %1952 = vmatprep.subr.mxu0 0.0
      %1953 = vmatpush2.msra.mxu0 0.0
      %1954 = vmatprep.subr.mxu0 0.0
      %1955 = vmatpush2.msra.mxu0 0.0
      %1956 = vmatprep.subr.mxu0 0.0
      %1957 = vmatpush2.msra.mxu0 0.0
      %1958 = vmatprep.subr.mxu0 0.0
      %1959 = vmatpush2.msra.mxu0 0.0
      %1960 = vmatprep.subr.mxu0 0.0
      %1961 = vmatpush2.msra.mxu0 0.0
      %1962 = vmatprep.mubr.f32.mxu0 0.0
      %1963 = vmatmul.mubr.f32.gmra.mxu0 %v629
      %v1964 = vpop.f32.mrf.mxu0
      %v1965 = vadd.f32 0.0, %v1964
      %v1966 = vpop.f32.mrf.mxu0
      %1967 = vmatprep.mubr.f32.mxu0 0.0
      %1968 = vmatmul.mubr.f32.gmra.mxu0 %v631
      %v1969 = vpop.f32.mrf.mxu0
      %v1970 = vadd.f32 0.0, %v1969
      %v1971 = vpop.f32.mrf.mxu0
      %1972 = vmatprep.mubr.f32.mxu0 0.0
      %1973 = vmatmul.mubr.f32.gmra.mxu0 %v633
      %v1974 = vpop.f32.mrf.mxu0
      %v1975 = vadd.f32 0.0, %v1974
      %v1976 = vpop.f32.mrf.mxu0
      %1977 = vmatprep.mubr.f32.mxu0 0.0
      %1978 = vmatmul.mubr.f32.gmra.mxu0 %v635
      %v1979 = vpop.f32.mrf.mxu0
      %v1980 = vadd.f32 0.0, %v1979
      %v1981 = vpop.f32.mrf.mxu0
      %1982 = vmatprep.mubr.f32.mxu0 0.0
      %1983 = vmatmul.mubr.f32.gmra.mxu0 %v637
      %v1984 = vpop.f32.mrf.mxu0
      %v1985 = vadd.f32 0.0, %v1984
      %v1986 = vpop.f32.mrf.mxu0
      %1987 = vmatprep.mubr.f32.mxu0 0.0
      %1988 = vmatmul.mubr.f32.gmra.mxu0 %v639
      %v1989 = vpop.f32.mrf.mxu0
      %v1990 = vadd.f32 0.0, %v1989
      %v1991 = vpop.f32.mrf.mxu0
      %1992 = vmatprep.mubr.f32.mxu0 0.0
      %1993 = vmatmul.mubr.f32.gmra.mxu0 %v1163
      %v1994 = vpop.f32.mrf.mxu0
      %v1995 = vadd.f32 0.0, %v1994
      %v1996 = vpop.f32.mrf.mxu0
      %1997 = vmatprep.mubr.f32.mxu0 0.0
      %1998 = vmatmul.mubr.f32.gmra.mxu0 %v352
      %v1999 = vpop.f32.mrf.mxu0
      %v2000 = vadd.f32 0.0, %v1999
      %v2001 = vpop.f32.mrf.mxu0
      %2002 = vmatprep.mubr.f32.mxu0 0.0
      %2003 = vmatmul.mubr.f32.gmra.mxu0 %v355
      %v2004 = vpop.f32.mrf.mxu0
      %v2005 = vadd.f32 0.0, %v2004
      %v2006 = vpop.f32.mrf.mxu0
      %2007 = vmatprep.mubr.f32.mxu0 0.0
      %2008 = vmatmul.mubr.f32.gmra.mxu0 %v358
      %v2009 = vpop.f32.mrf.mxu0
      %v2010 = vadd.f32 0.0, %v2009
      %v2011 = vpop.f32.mrf.mxu0
      %2012 = vmatprep.mubr.f32.mxu0 0.0
      %2013 = vmatmul.mubr.f32.gmra.mxu0 %v361
      %v2014 = vpop.f32.mrf.mxu0
      %v2015 = vadd.f32 0.0, %v2014
      %v2016 = vpop.f32.mrf.mxu0
      %2017 = vmatprep.mubr.f32.mxu0 0.0
      %2018 = vmatmul.mubr.f32.gmra.mxu0 %v364
      %v2019 = vpop.f32.mrf.mxu0
      %v2020 = vadd.f32 0.0, %v2019
      %v2021 = vpop.f32.mrf.mxu0
      %2022 = vmatprep.mubr.f32.mxu0 0.0
      %2023 = vmatmul.mubr.f32.gmra.mxu0 %v367
      %v2024 = vpop.f32.mrf.mxu0
      %v2025 = vadd.f32 0.0, %v2024
      %v2026 = vpop.f32.mrf.mxu0
      %2027 = vmatprep.mubr.f32.mxu0 0.0
      %2028 = vmatmul.mubr.f32.gmra.mxu0 %v1165
      %v2029 = vpop.f32.mrf.mxu0
      %v2030 = vadd.f32 0.0, %v2029
      %v2031 = vpop.f32.mrf.mxu0
      %2032 = vmatprep.mubr.f32.mxu0 0.0
      %2033 = vmatmul.mubr.f32.gmra.mxu0 %v643
      %v2034 = vpop.f32.mrf.mxu0
      %v2035 = vadd.f32 0.0, %v2034
      %v2036 = vpop.f32.mrf.mxu0
      %2037 = vmatprep.mubr.f32.mxu0 0.0
      %2038 = vmatmul.mubr.f32.gmra.mxu0 %v645
      %v2039 = vpop.f32.mrf.mxu0
      %v2040 = vadd.f32 0.0, %v2039
      %v2041 = vpop.f32.mrf.mxu0
      %2042 = vmatprep.mubr.f32.mxu0 0.0
      %2043 = vmatmul.mubr.f32.gmra.mxu0 %v647
      %v2044 = vpop.f32.mrf.mxu0
      %v2045 = vadd.f32 0.0, %v2044
      %v2046 = vpop.f32.mrf.mxu0
      %2047 = vmatprep.mubr.f32.mxu0 0.0
      %2048 = vmatmul.mubr.f32.gmra.mxu0 %v649
      %v2049 = vpop.f32.mrf.mxu0
      %v2050 = vadd.f32 0.0, %v2049
      %v2051 = vpop.f32.mrf.mxu0
      %2052 = vmatprep.mubr.f32.mxu0 0.0
      %2053 = vmatmul.mubr.f32.gmra.mxu0 %v651
      %v2054 = vpop.f32.mrf.mxu0
      %v2055 = vadd.f32 0.0, %v2054
      %v2056 = vpop.f32.mrf.mxu0
      %2057 = vmatprep.mubr.f32.mxu0 0.0
      %2058 = vmatmul.mubr.f32.gmra.mxu0 %v653
      %v2059 = vpop.f32.mrf.mxu0
      %v2060 = vadd.f32 0.0, %v2059
      %v2061 = vpop.f32.mrf.mxu0
      %2062 = vmatprep.mubr.f32.mxu0 0.0
      %2063 = vmatmul.mubr.f32.gmra.mxu0 %v1891
      %v2064 = vpop.f32.mrf.mxu0
      %v2065 = vadd.f32 0.0, %v2064
      %v2066 = vpop.f32.mrf.mxu0
      %2067 = vmatprep.mubr.f32.mxu0 0.0
      %2068 = vmatmul.mubr.f32.gmra.mxu0 %v387
      %v2069 = vpop.f32.mrf.mxu0
      %v2070 = vadd.f32 0.0, %v2069
      %v2071 = vpop.f32.mrf.mxu0
      %2072 = vmatprep.mubr.f32.mxu0 0.0
      %2073 = vmatmul.mubr.f32.gmra.mxu0 %v390
      %v2074 = vpop.f32.mrf.mxu0
      %v2075 = vadd.f32 0.0, %v2074
      %v2076 = vpop.f32.mrf.mxu0
      %2077 = vmatprep.mubr.f32.mxu0 0.0
      %2078 = vmatmul.mubr.f32.gmra.mxu0 %v393
      %v2079 = vpop.f32.mrf.mxu0
      %v2080 = vadd.f32 0.0, %v2079
      %v2081 = vpop.f32.mrf.mxu0
      %2082 = vmatprep.mubr.f32.mxu0 0.0
      %2083 = vmatmul.mubr.f32.gmra.mxu0 %v396
      %v2084 = vpop.f32.mrf.mxu0
      %v2085 = vadd.f32 0.0, %v2084
      %v2086 = vpop.f32.mrf.mxu0
      %2087 = vmatprep.mubr.f32.mxu0 0.0
      %2088 = vmatmul.mubr.f32.gmra.mxu0 %v399
      %v2089 = vpop.f32.mrf.mxu0
      %v2090 = vadd.f32 0.0, %v2089
      %v2091 = vpop.f32.mrf.mxu0
      %2092 = vmatprep.mubr.f32.mxu0 0.0
      %2093 = vmatmul.mubr.f32.gmra.mxu0 %v402
      %v2094 = vpop.f32.mrf.mxu0
      %v2095 = vadd.f32 0.0, %v2094
      %v2096 = vpop.f32.mrf.mxu0
      %2097 = vmatprep.mubr.f32.mxu0 0.0
      %2098 = vmatmul.mubr.f32.gmra.mxu0 %v1893
      %v2099 = vpop.f32.mrf.mxu0
      %v2100 = vadd.f32 0.0, %v2099
      %v2101 = vpop.f32.mrf.mxu0
      %2102 = vdwg.mxu0
      %v2103 = vadd.f32 %v1861, %v1965
      %v2104 = vadd.f32 %v1862, %v1970
      %v2105 = vadd.f32 %v1863, %v1975
      %v2106 = vadd.f32 %v1864, %v1980
      %v2107 = vadd.f32 %v1865, %v1985
      %v2108 = vadd.f32 %v1866, %v1990
      %v2109 = vadd.f32 %v1867, %v1995
      %v2110 = vadd.f32 %v1868, %v2000
      %v2111 = vadd.f32 %v1869, %v2005
      %v2112 = vadd.f32 %v1870, %v2010
      %v2113 = vadd.f32 %v1871, %v2015
      %v2114 = vadd.f32 %v1872, %v2020
      %v2115 = vadd.f32 %v1873, %v2025
      %v2116 = vadd.f32 %v1874, %v2030
      %v2117 = vadd.f32 %v1875, %v2035
      %v2118 = vadd.f32 %v1876, %v2040
      %v2119 = vadd.f32 %v1877, %v2045
      %v2120 = vadd.f32 %v1878, %v2050
      %v2121 = vadd.f32 %v1879, %v2055
      %v2122 = vadd.f32 %v1880, %v2060
      %v2123 = vadd.f32 %v1881, %v2065
      %v2124 = vadd.f32 %v1882, %v2070
      %v2125 = vadd.f32 %v1883, %v2075
      %v2126 = vadd.f32 %v1884, %v2080
      %v2127 = vadd.f32 %v1885, %v2085
      %v2128 = vadd.f32 %v1886, %v2090
      %v2129 = vadd.f32 %v1887, %v2095
      %v2130 = vadd.f32 %v1888, %v2100
      %v2132 = vrot.slane %v287, 1
      %v2133 = vsel %vm306, %v343, %v2132
      %s2134 = scalar_lea.vmem %s1, 28
      %v2135 = vld [vmem:[%s2134] sm:$0xf]
      %v2136 = vsel %vm347, %v2133, 0
      %v2139 = vsel %vm418, %v2135, 0
      %2141 = vmatprep.subr.mxu0 0.0
      %2142 = vmatpush1.msra.mxu0 0.0
      %2143 = vmatprep.subr.mxu0 0.0
      %2144 = vmatpush1.msra.mxu0 0.0
      %2145 = vmatprep.subr.mxu0 0.0
      %2146 = vmatpush1.msra.mxu0 0.0
      %2147 = vmatprep.subr.mxu0 0.0
      %2148 = vmatpush1.msra.mxu0 0.0
      %2149 = vmatprep.subr.mxu0 0.0
      %2150 = vmatpush1.msra.mxu0 0.0
      %2151 = vmatprep.subr.mxu0 0.0
      %2152 = vmatpush1.msra.mxu0 0.0
      %2153 = vmatprep.subr.mxu0 0.0
      %2154 = vmatpush1.msra.mxu0 0.0
      %2155 = vmatprep.subr.mxu0 0.0
      %2156 = vmatpush1.msra.mxu0 0.0
      %2157 = vmatprep.subr.mxu0 0.0
      %2158 = vmatpush1.msra.mxu0 0.0
      %2159 = vmatprep.subr.mxu0 0.0
      %2160 = vmatpush1.msra.mxu0 0.0
      %2161 = vmatprep.subr.mxu0 0.0
      %2162 = vmatpush1.msra.mxu0 0.0
      %2163 = vmatprep.subr.mxu0 0.0
      %2164 = vmatpush1.msra.mxu0 0.0
      %2165 = vmatprep.subr.mxu0 0.0
      %2166 = vmatpush1.msra.mxu0 0.0
      %2167 = vmatprep.subr.mxu0 0.0
      %2168 = vmatpush1.msra.mxu0 0.0
      %2169 = vmatprep.subr.mxu0 0.0
      %2170 = vmatpush1.msra.mxu0 0.0
      %2171 = vmatprep.subr.mxu0 0.0
      %2172 = vmatpush1.msra.mxu0 %v2139
      %2173 = vmatprep.subr.mxu0 0.0
      %2174 = vmatpush2.msra.mxu0 0.0
      %2175 = vmatprep.subr.mxu0 0.0
      %2176 = vmatpush2.msra.mxu0 0.0
      %2177 = vmatprep.subr.mxu0 0.0
      %2178 = vmatpush2.msra.mxu0 0.0
      %2179 = vmatprep.subr.mxu0 0.0
      %2180 = vmatpush2.msra.mxu0 0.0
      %2181 = vmatprep.subr.mxu0 0.0
      %2182 = vmatpush2.msra.mxu0 0.0
      %2183 = vmatprep.subr.mxu0 0.0
      %2184 = vmatpush2.msra.mxu0 0.0
      %2185 = vmatprep.subr.mxu0 0.0
      %2186 = vmatpush2.msra.mxu0 0.0
      %2187 = vmatprep.subr.mxu0 0.0
      %2188 = vmatpush2.msra.mxu0 0.0
      %2189 = vmatprep.subr.mxu0 0.0
      %2190 = vmatpush2.msra.mxu0 0.0
      %2191 = vmatprep.subr.mxu0 0.0
      %2192 = vmatpush2.msra.mxu0 0.0
      %2193 = vmatprep.subr.mxu0 0.0
      %2194 = vmatpush2.msra.mxu0 0.0
      %2195 = vmatprep.subr.mxu0 0.0
      %2196 = vmatpush2.msra.mxu0 0.0
      %2197 = vmatprep.subr.mxu0 0.0
      %2198 = vmatpush2.msra.mxu0 0.0
      %2199 = vmatprep.subr.mxu0 0.0
      %2200 = vmatpush2.msra.mxu0 0.0
      %2201 = vmatprep.subr.mxu0 0.0
      %2202 = vmatpush2.msra.mxu0 0.0
      %2203 = vmatprep.subr.mxu0 0.0
      %2204 = vmatpush2.msra.mxu0 0.0
      %2205 = vmatprep.mubr.f32.mxu0 0.0
      %2206 = vmatmul.mubr.f32.gmra.mxu0 %v352
      %v2207 = vpop.f32.mrf.mxu0
      %v2208 = vadd.f32 0.0, %v2207
      %v2209 = vpop.f32.mrf.mxu0
      %2210 = vmatprep.mubr.f32.mxu0 0.0
      %2211 = vmatmul.mubr.f32.gmra.mxu0 %v355
      %v2212 = vpop.f32.mrf.mxu0
      %v2213 = vadd.f32 0.0, %v2212
      %v2214 = vpop.f32.mrf.mxu0
      %2215 = vmatprep.mubr.f32.mxu0 0.0
      %2216 = vmatmul.mubr.f32.gmra.mxu0 %v358
      %v2217 = vpop.f32.mrf.mxu0
      %v2218 = vadd.f32 0.0, %v2217
      %v2219 = vpop.f32.mrf.mxu0
      %2220 = vmatprep.mubr.f32.mxu0 0.0
      %2221 = vmatmul.mubr.f32.gmra.mxu0 %v361
      %v2222 = vpop.f32.mrf.mxu0
      %v2223 = vadd.f32 0.0, %v2222
      %v2224 = vpop.f32.mrf.mxu0
      %2225 = vmatprep.mubr.f32.mxu0 0.0
      %2226 = vmatmul.mubr.f32.gmra.mxu0 %v364
      %v2227 = vpop.f32.mrf.mxu0
      %v2228 = vadd.f32 0.0, %v2227
      %v2229 = vpop.f32.mrf.mxu0
      %2230 = vmatprep.mubr.f32.mxu0 0.0
      %2231 = vmatmul.mubr.f32.gmra.mxu0 %v367
      %v2232 = vpop.f32.mrf.mxu0
      %v2233 = vadd.f32 0.0, %v2232
      %v2234 = vpop.f32.mrf.mxu0
      %2235 = vmatprep.mubr.f32.mxu0 0.0
      %2236 = vmatmul.mubr.f32.gmra.mxu0 %v1165
      %v2237 = vpop.f32.mrf.mxu0
      %v2238 = vadd.f32 0.0, %v2237
      %v2239 = vpop.f32.mrf.mxu0
      %2240 = vmatprep.mubr.f32.mxu0 0.0
      %2241 = vmatmul.mubr.f32.gmra.mxu0 %v371
      %v2242 = vpop.f32.mrf.mxu0
      %v2243 = vadd.f32 0.0, %v2242
      %v2244 = vpop.f32.mrf.mxu0
      %2245 = vmatprep.mubr.f32.mxu0 0.0
      %2246 = vmatmul.mubr.f32.gmra.mxu0 %v373
      %v2247 = vpop.f32.mrf.mxu0
      %v2248 = vadd.f32 0.0, %v2247
      %v2249 = vpop.f32.mrf.mxu0
      %2250 = vmatprep.mubr.f32.mxu0 0.0
      %2251 = vmatmul.mubr.f32.gmra.mxu0 %v375
      %v2252 = vpop.f32.mrf.mxu0
      %v2253 = vadd.f32 0.0, %v2252
      %v2254 = vpop.f32.mrf.mxu0
      %2255 = vmatprep.mubr.f32.mxu0 0.0
      %2256 = vmatmul.mubr.f32.gmra.mxu0 %v377
      %v2257 = vpop.f32.mrf.mxu0
      %v2258 = vadd.f32 0.0, %v2257
      %v2259 = vpop.f32.mrf.mxu0
      %2260 = vmatprep.mubr.f32.mxu0 0.0
      %2261 = vmatmul.mubr.f32.gmra.mxu0 %v379
      %v2262 = vpop.f32.mrf.mxu0
      %v2263 = vadd.f32 0.0, %v2262
      %v2264 = vpop.f32.mrf.mxu0
      %2265 = vmatprep.mubr.f32.mxu0 0.0
      %2266 = vmatmul.mubr.f32.gmra.mxu0 %v381
      %v2267 = vpop.f32.mrf.mxu0
      %v2268 = vadd.f32 0.0, %v2267
      %v2269 = vpop.f32.mrf.mxu0
      %2270 = vmatprep.mubr.f32.mxu0 0.0
      %2271 = vmatmul.mubr.f32.gmra.mxu0 %v1408
      %v2272 = vpop.f32.mrf.mxu0
      %v2273 = vadd.f32 0.0, %v2272
      %v2274 = vpop.f32.mrf.mxu0
      %2275 = vmatprep.mubr.f32.mxu0 0.0
      %2276 = vmatmul.mubr.f32.gmra.mxu0 %v387
      %v2277 = vpop.f32.mrf.mxu0
      %v2278 = vadd.f32 0.0, %v2277
      %v2279 = vpop.f32.mrf.mxu0
      %2280 = vmatprep.mubr.f32.mxu0 0.0
      %2281 = vmatmul.mubr.f32.gmra.mxu0 %v390
      %v2282 = vpop.f32.mrf.mxu0
      %v2283 = vadd.f32 0.0, %v2282
      %v2284 = vpop.f32.mrf.mxu0
      %2285 = vmatprep.mubr.f32.mxu0 0.0
      %2286 = vmatmul.mubr.f32.gmra.mxu0 %v393
      %v2287 = vpop.f32.mrf.mxu0
      %v2288 = vadd.f32 0.0, %v2287
      %v2289 = vpop.f32.mrf.mxu0
      %2290 = vmatprep.mubr.f32.mxu0 0.0
      %2291 = vmatmul.mubr.f32.gmra.mxu0 %v396
      %v2292 = vpop.f32.mrf.mxu0
      %v2293 = vadd.f32 0.0, %v2292
      %v2294 = vpop.f32.mrf.mxu0
      %2295 = vmatprep.mubr.f32.mxu0 0.0
      %2296 = vmatmul.mubr.f32.gmra.mxu0 %v399
      %v2297 = vpop.f32.mrf.mxu0
      %v2298 = vadd.f32 0.0, %v2297
      %v2299 = vpop.f32.mrf.mxu0
      %2300 = vmatprep.mubr.f32.mxu0 0.0
      %2301 = vmatmul.mubr.f32.gmra.mxu0 %v402
      %v2302 = vpop.f32.mrf.mxu0
      %v2303 = vadd.f32 0.0, %v2302
      %v2304 = vpop.f32.mrf.mxu0
      %2305 = vmatprep.mubr.f32.mxu0 0.0
      %2306 = vmatmul.mubr.f32.gmra.mxu0 %v1893
      %v2307 = vpop.f32.mrf.mxu0
      %v2308 = vadd.f32 0.0, %v2307
      %v2309 = vpop.f32.mrf.mxu0
      %2310 = vmatprep.mubr.f32.mxu0 0.0
      %2311 = vmatmul.mubr.f32.gmra.mxu0 %v406
      %v2312 = vpop.f32.mrf.mxu0
      %v2313 = vadd.f32 0.0, %v2312
      %v2314 = vpop.f32.mrf.mxu0
      %2315 = vmatprep.mubr.f32.mxu0 0.0
      %2316 = vmatmul.mubr.f32.gmra.mxu0 %v408
      %v2317 = vpop.f32.mrf.mxu0
      %v2318 = vadd.f32 0.0, %v2317
      %v2319 = vpop.f32.mrf.mxu0
      %2320 = vmatprep.mubr.f32.mxu0 0.0
      %2321 = vmatmul.mubr.f32.gmra.mxu0 %v410
      %v2322 = vpop.f32.mrf.mxu0
      %v2323 = vadd.f32 0.0, %v2322
      %v2324 = vpop.f32.mrf.mxu0
      %2325 = vmatprep.mubr.f32.mxu0 0.0
      %2326 = vmatmul.mubr.f32.gmra.mxu0 %v412
      %v2327 = vpop.f32.mrf.mxu0
      %v2328 = vadd.f32 0.0, %v2327
      %v2329 = vpop.f32.mrf.mxu0
      %2330 = vmatprep.mubr.f32.mxu0 0.0
      %2331 = vmatmul.mubr.f32.gmra.mxu0 %v414
      %v2332 = vpop.f32.mrf.mxu0
      %v2333 = vadd.f32 0.0, %v2332
      %v2334 = vpop.f32.mrf.mxu0
      %2335 = vmatprep.mubr.f32.mxu0 0.0
      %2336 = vmatmul.mubr.f32.gmra.mxu0 %v416
      %v2337 = vpop.f32.mrf.mxu0
      %v2338 = vadd.f32 0.0, %v2337
      %v2339 = vpop.f32.mrf.mxu0
      %2340 = vmatprep.mubr.f32.mxu0 0.0
      %2341 = vmatmul.mubr.f32.gmra.mxu0 %v2136
      %v2342 = vpop.f32.mrf.mxu0
      %v2343 = vadd.f32 0.0, %v2342
      %v2344 = vpop.f32.mrf.mxu0
      %2345 = vdwg.mxu0
      %v2346 = vadd.f32 %v2103, %v2208
      %v2347 = vadd.f32 %v2104, %v2213
      %v2348 = vadd.f32 %v2105, %v2218
      %v2349 = vadd.f32 %v2106, %v2223
      %v2350 = vadd.f32 %v2107, %v2228
      %v2351 = vadd.f32 %v2108, %v2233
      %v2352 = vadd.f32 %v2109, %v2238
      %v2353 = vadd.f32 %v2110, %v2243
      %v2354 = vadd.f32 %v2111, %v2248
      %v2355 = vadd.f32 %v2112, %v2253
      %v2356 = vadd.f32 %v2113, %v2258
      %v2357 = vadd.f32 %v2114, %v2263
      %v2358 = vadd.f32 %v2115, %v2268
      %v2359 = vadd.f32 %v2116, %v2273
      %v2360 = vadd.f32 %v2117, %v2278
      %v2361 = vadd.f32 %v2118, %v2283
      %v2362 = vadd.f32 %v2119, %v2288
      %v2363 = vadd.f32 %v2120, %v2293
      %v2364 = vadd.f32 %v2121, %v2298
      %v2365 = vadd.f32 %v2122, %v2303
      %v2366 = vadd.f32 %v2123, %v2308
      %v2367 = vadd.f32 %v2124, %v2313
      %v2368 = vadd.f32 %v2125, %v2318
      %v2369 = vadd.f32 %v2126, %v2323
      %v2370 = vadd.f32 %v2127, %v2328
      %v2371 = vadd.f32 %v2128, %v2333
      %v2372 = vadd.f32 %v2129, %v2338
      %v2373 = vadd.f32 %v2130, %v2343
      %v2375 = vrot.slane %v296, 1
      %v2376 = vsel %vm306, %v893, %v2375
      %s2377 = scalar_lea.vmem %s1, 32
      %v2378 = vld [vmem:[%s2377] sm:$0xf]
      %v2379 = vsel %vm347, %v2376, 0
      %v2382 = vsel %vm418, %v2378, 0
      %2384 = vmatprep.subr.mxu0 0.0
      %2385 = vmatpush1.msra.mxu0 0.0
      %2386 = vmatprep.subr.mxu0 0.0
      %2387 = vmatpush1.msra.mxu0 0.0
      %2388 = vmatprep.subr.mxu0 0.0
      %2389 = vmatpush1.msra.mxu0 0.0
      %2390 = vmatprep.subr.mxu0 0.0
      %2391 = vmatpush1.msra.mxu0 0.0
      %2392 = vmatprep.subr.mxu0 0.0
      %2393 = vmatpush1.msra.mxu0 0.0
      %2394 = vmatprep.subr.mxu0 0.0
      %2395 = vmatpush1.msra.mxu0 0.0
      %2396 = vmatprep.subr.mxu0 0.0
      %2397 = vmatpush1.msra.mxu0 0.0
      %2398 = vmatprep.subr.mxu0 0.0
      %2399 = vmatpush1.msra.mxu0 0.0
      %2400 = vmatprep.subr.mxu0 0.0
      %2401 = vmatpush1.msra.mxu0 0.0
      %2402 = vmatprep.subr.mxu0 0.0
      %2403 = vmatpush1.msra.mxu0 0.0
      %2404 = vmatprep.subr.mxu0 0.0
      %2405 = vmatpush1.msra.mxu0 0.0
      %2406 = vmatprep.subr.mxu0 0.0
      %2407 = vmatpush1.msra.mxu0 0.0
      %2408 = vmatprep.subr.mxu0 0.0
      %2409 = vmatpush1.msra.mxu0 0.0
      %2410 = vmatprep.subr.mxu0 0.0
      %2411 = vmatpush1.msra.mxu0 0.0
      %2412 = vmatprep.subr.mxu0 0.0
      %2413 = vmatpush1.msra.mxu0 0.0
      %2414 = vmatprep.subr.mxu0 0.0
      %2415 = vmatpush1.msra.mxu0 %v2382
      %2416 = vmatprep.subr.mxu0 0.0
      %2417 = vmatpush2.msra.mxu0 0.0
      %2418 = vmatprep.subr.mxu0 0.0
      %2419 = vmatpush2.msra.mxu0 0.0
      %2420 = vmatprep.subr.mxu0 0.0
      %2421 = vmatpush2.msra.mxu0 0.0
      %2422 = vmatprep.subr.mxu0 0.0
      %2423 = vmatpush2.msra.mxu0 0.0
      %2424 = vmatprep.subr.mxu0 0.0
      %2425 = vmatpush2.msra.mxu0 0.0
      %2426 = vmatprep.subr.mxu0 0.0
      %2427 = vmatpush2.msra.mxu0 0.0
      %2428 = vmatprep.subr.mxu0 0.0
      %2429 = vmatpush2.msra.mxu0 0.0
      %2430 = vmatprep.subr.mxu0 0.0
      %2431 = vmatpush2.msra.mxu0 0.0
      %2432 = vmatprep.subr.mxu0 0.0
      %2433 = vmatpush2.msra.mxu0 0.0
      %2434 = vmatprep.subr.mxu0 0.0
      %2435 = vmatpush2.msra.mxu0 0.0
      %2436 = vmatprep.subr.mxu0 0.0
      %2437 = vmatpush2.msra.mxu0 0.0
      %2438 = vmatprep.subr.mxu0 0.0
      %2439 = vmatpush2.msra.mxu0 0.0
      %2440 = vmatprep.subr.mxu0 0.0
      %2441 = vmatpush2.msra.mxu0 0.0
      %2442 = vmatprep.subr.mxu0 0.0
      %2443 = vmatpush2.msra.mxu0 0.0
      %2444 = vmatprep.subr.mxu0 0.0
      %2445 = vmatpush2.msra.mxu0 0.0
      %2446 = vmatprep.subr.mxu0 0.0
      %2447 = vmatpush2.msra.mxu0 0.0
      %2448 = vmatprep.mubr.f32.mxu0 0.0
      %2449 = vmatmul.mubr.f32.gmra.mxu0 %v371
      %v2450 = vpop.f32.mrf.mxu0
      %v2451 = vadd.f32 0.0, %v2450
      %v2452 = vpop.f32.mrf.mxu0
      %2453 = vmatprep.mubr.f32.mxu0 0.0
      %2454 = vmatmul.mubr.f32.gmra.mxu0 %v373
      %v2455 = vpop.f32.mrf.mxu0
      %v2456 = vadd.f32 0.0, %v2455
      %v2457 = vpop.f32.mrf.mxu0
      %2458 = vmatprep.mubr.f32.mxu0 0.0
      %2459 = vmatmul.mubr.f32.gmra.mxu0 %v375
      %v2460 = vpop.f32.mrf.mxu0
      %v2461 = vadd.f32 0.0, %v2460
      %v2462 = vpop.f32.mrf.mxu0
      %2463 = vmatprep.mubr.f32.mxu0 0.0
      %2464 = vmatmul.mubr.f32.gmra.mxu0 %v377
      %v2465 = vpop.f32.mrf.mxu0
      %v2466 = vadd.f32 0.0, %v2465
      %v2467 = vpop.f32.mrf.mxu0
      %2468 = vmatprep.mubr.f32.mxu0 0.0
      %2469 = vmatmul.mubr.f32.gmra.mxu0 %v379
      %v2470 = vpop.f32.mrf.mxu0
      %v2471 = vadd.f32 0.0, %v2470
      %v2472 = vpop.f32.mrf.mxu0
      %2473 = vmatprep.mubr.f32.mxu0 0.0
      %2474 = vmatmul.mubr.f32.gmra.mxu0 %v381
      %v2475 = vpop.f32.mrf.mxu0
      %v2476 = vadd.f32 0.0, %v2475
      %v2477 = vpop.f32.mrf.mxu0
      %2478 = vmatprep.mubr.f32.mxu0 0.0
      %2479 = vmatmul.mubr.f32.gmra.mxu0 %v1408
      %v2480 = vpop.f32.mrf.mxu0
      %v2481 = vadd.f32 0.0, %v2480
      %v2482 = vpop.f32.mrf.mxu0
      %2483 = vmatprep.mubr.f32.mxu0 0.0
      %2484 = vmatmul.mubr.f32.gmra.mxu0 %v899
      %v2485 = vpop.f32.mrf.mxu0
      %v2486 = vadd.f32 0.0, %v2485
      %v2487 = vpop.f32.mrf.mxu0
      %2488 = vmatprep.mubr.f32.mxu0 0.0
      %2489 = vmatmul.mubr.f32.gmra.mxu0 %v901
      %v2490 = vpop.f32.mrf.mxu0
      %v2491 = vadd.f32 0.0, %v2490
      %v2492 = vpop.f32.mrf.mxu0
      %2493 = vmatprep.mubr.f32.mxu0 0.0
      %2494 = vmatmul.mubr.f32.gmra.mxu0 %v903
      %v2495 = vpop.f32.mrf.mxu0
      %v2496 = vadd.f32 0.0, %v2495
      %v2497 = vpop.f32.mrf.mxu0
      %2498 = vmatprep.mubr.f32.mxu0 0.0
      %2499 = vmatmul.mubr.f32.gmra.mxu0 %v905
      %v2500 = vpop.f32.mrf.mxu0
      %v2501 = vadd.f32 0.0, %v2500
      %v2502 = vpop.f32.mrf.mxu0
      %2503 = vmatprep.mubr.f32.mxu0 0.0
      %2504 = vmatmul.mubr.f32.gmra.mxu0 %v907
      %v2505 = vpop.f32.mrf.mxu0
      %v2506 = vadd.f32 0.0, %v2505
      %v2507 = vpop.f32.mrf.mxu0
      %2508 = vmatprep.mubr.f32.mxu0 0.0
      %2509 = vmatmul.mubr.f32.gmra.mxu0 %v909
      %v2510 = vpop.f32.mrf.mxu0
      %v2511 = vadd.f32 0.0, %v2510
      %v2512 = vpop.f32.mrf.mxu0
      %2513 = vmatprep.mubr.f32.mxu0 0.0
      %2514 = vmatmul.mubr.f32.gmra.mxu0 %v1651
      %v2515 = vpop.f32.mrf.mxu0
      %v2516 = vadd.f32 0.0, %v2515
      %v2517 = vpop.f32.mrf.mxu0
      %2518 = vmatprep.mubr.f32.mxu0 0.0
      %2519 = vmatmul.mubr.f32.gmra.mxu0 %v406
      %v2520 = vpop.f32.mrf.mxu0
      %v2521 = vadd.f32 0.0, %v2520
      %v2522 = vpop.f32.mrf.mxu0
      %2523 = vmatprep.mubr.f32.mxu0 0.0
      %2524 = vmatmul.mubr.f32.gmra.mxu0 %v408
      %v2525 = vpop.f32.mrf.mxu0
      %v2526 = vadd.f32 0.0, %v2525
      %v2527 = vpop.f32.mrf.mxu0
      %2528 = vmatprep.mubr.f32.mxu0 0.0
      %2529 = vmatmul.mubr.f32.gmra.mxu0 %v410
      %v2530 = vpop.f32.mrf.mxu0
      %v2531 = vadd.f32 0.0, %v2530
      %v2532 = vpop.f32.mrf.mxu0
      %2533 = vmatprep.mubr.f32.mxu0 0.0
      %2534 = vmatmul.mubr.f32.gmra.mxu0 %v412
      %v2535 = vpop.f32.mrf.mxu0
      %v2536 = vadd.f32 0.0, %v2535
      %v2537 = vpop.f32.mrf.mxu0
      %2538 = vmatprep.mubr.f32.mxu0 0.0
      %2539 = vmatmul.mubr.f32.gmra.mxu0 %v414
      %v2540 = vpop.f32.mrf.mxu0
      %v2541 = vadd.f32 0.0, %v2540
      %v2542 = vpop.f32.mrf.mxu0
      %2543 = vmatprep.mubr.f32.mxu0 0.0
      %2544 = vmatmul.mubr.f32.gmra.mxu0 %v416
      %v2545 = vpop.f32.mrf.mxu0
      %v2546 = vadd.f32 0.0, %v2545
      %v2547 = vpop.f32.mrf.mxu0
      %2548 = vmatprep.mubr.f32.mxu0 0.0
      %2549 = vmatmul.mubr.f32.gmra.mxu0 %v2136
      %v2550 = vpop.f32.mrf.mxu0
      %v2551 = vadd.f32 0.0, %v2550
      %v2552 = vpop.f32.mrf.mxu0
      %2553 = vmatprep.mubr.f32.mxu0 0.0
      %2554 = vmatmul.mubr.f32.gmra.mxu0 %v913
      %v2555 = vpop.f32.mrf.mxu0
      %v2556 = vadd.f32 0.0, %v2555
      %v2557 = vpop.f32.mrf.mxu0
      %2558 = vmatprep.mubr.f32.mxu0 0.0
      %2559 = vmatmul.mubr.f32.gmra.mxu0 %v915
      %v2560 = vpop.f32.mrf.mxu0
      %v2561 = vadd.f32 0.0, %v2560
      %v2562 = vpop.f32.mrf.mxu0
      %2563 = vmatprep.mubr.f32.mxu0 0.0
      %2564 = vmatmul.mubr.f32.gmra.mxu0 %v917
      %v2565 = vpop.f32.mrf.mxu0
      %v2566 = vadd.f32 0.0, %v2565
      %v2567 = vpop.f32.mrf.mxu0
      %2568 = vmatprep.mubr.f32.mxu0 0.0
      %2569 = vmatmul.mubr.f32.gmra.mxu0 %v919
      %v2570 = vpop.f32.mrf.mxu0
      %v2571 = vadd.f32 0.0, %v2570
      %v2572 = vpop.f32.mrf.mxu0
      %2573 = vmatprep.mubr.f32.mxu0 0.0
      %2574 = vmatmul.mubr.f32.gmra.mxu0 %v921
      %v2575 = vpop.f32.mrf.mxu0
      %v2576 = vadd.f32 0.0, %v2575
      %v2577 = vpop.f32.mrf.mxu0
      %2578 = vmatprep.mubr.f32.mxu0 0.0
      %2579 = vmatmul.mubr.f32.gmra.mxu0 %v923
      %v2580 = vpop.f32.mrf.mxu0
      %v2581 = vadd.f32 0.0, %v2580
      %v2582 = vpop.f32.mrf.mxu0
      %2583 = vmatprep.mubr.f32.mxu0 0.0
      %2584 = vmatmul.mubr.f32.gmra.mxu0 %v2379
      %v2585 = vpop.f32.mrf.mxu0
      %v2586 = vadd.f32 0.0, %v2585
      %v2587 = vpop.f32.mrf.mxu0
      %2588 = vdwg.mxu0
      %v2589 = vadd.f32 %v2346, %v2451
      %v2590 = vadd.f32 %v2347, %v2456
      %v2591 = vadd.f32 %v2348, %v2461
      %v2592 = vadd.f32 %v2349, %v2466
      %v2593 = vadd.f32 %v2350, %v2471
      %v2594 = vadd.f32 %v2351, %v2476
      %v2595 = vadd.f32 %v2352, %v2481
      %v2596 = vadd.f32 %v2353, %v2486
      %v2597 = vadd.f32 %v2354, %v2491
      %v2598 = vadd.f32 %v2355, %v2496
      %v2599 = vadd.f32 %v2356, %v2501
      %v2600 = vadd.f32 %v2357, %v2506
      %v2601 = vadd.f32 %v2358, %v2511
      %v2602 = vadd.f32 %v2359, %v2516
      %v2603 = vadd.f32 %v2360, %v2521
      %v2604 = vadd.f32 %v2361, %v2526
      %v2605 = vadd.f32 %v2362, %v2531
      %v2606 = vadd.f32 %v2363, %v2536
      %v2607 = vadd.f32 %v2364, %v2541
      %v2608 = vadd.f32 %v2365, %v2546
      %v2609 = vadd.f32 %v2366, %v2551
      %v2610 = vadd.f32 %v2367, %v2556
      %v2611 = vadd.f32 %v2368, %v2561
      %v2612 = vadd.f32 %v2369, %v2566
      %v2613 = vadd.f32 %v2370, %v2571
      %v2614 = vadd.f32 %v2371, %v2576
      %v2615 = vadd.f32 %v2372, %v2581
      %v2616 = vadd.f32 %v2373, %v2586
      %v2617 = vld [vmem:[%s2] sm:$0x1]
      %v2618 = vld [vmem:[%s3] sm:$0x1]
      %v2619 = vld [vmem:[%s4] sm:$0x1]
      %v2620 = vmax.f32 %v2589, %v2596
      %v2621 = vmax.f32 %v2590, %v2597
      %v2622 = vmax.f32 %v2591, %v2598
      %v2623 = vmax.f32 %v2592, %v2599
      %v2624 = vmax.f32 %v2593, %v2600
      %v2625 = vmax.f32 %v2594, %v2601
      %v2626 = vmax.f32 %v2595, %v2602
      %v2627 = vmax.f32 %v2620, %v2603
      %v2628 = vmax.f32 %v2621, %v2604
      %v2629 = vmax.f32 %v2622, %v2605
      %v2630 = vmax.f32 %v2623, %v2606
      %v2631 = vmax.f32 %v2624, %v2607
      %v2632 = vmax.f32 %v2625, %v2608
      %v2633 = vmax.f32 %v2626, %v2609
      %v2634 = vmax.f32 %v2627, %v2610
      %v2635 = vmax.f32 %v2628, %v2611
      %v2636 = vmax.f32 %v2629, %v2612
      %v2637 = vmax.f32 %v2630, %v2613
      %v2638 = vmax.f32 %v2631, %v2614
      %v2639 = vmax.f32 %v2632, %v2615
      %v2640 = vmax.f32 %v2633, %v2616
      %v2642 = vlaneseq
      %v2643 = vshrl.u32 %v2642, 7
      %v2644 = vsub.s32 0, %v2643
      %v2645 = vrot.slane %v2617, %v2644
      %v2647 = vadd.f32 %v2634, %v2645
      %v2648 = vadd.f32 %v2635, %v2645
      %v2649 = vadd.f32 %v2636, %v2645
      %v2650 = vadd.f32 %v2637, %v2645
      %v2651 = vadd.f32 %v2638, %v2645
      %v2652 = vadd.f32 %v2639, %v2645
      %v2653 = vadd.f32 %v2640, %v2645
      %v2654 = vmax.f32 %v2647, 0.0
      %v2655 = vmax.f32 %v2648, 0.0
      %v2656 = vmax.f32 %v2649, 0.0
      %v2657 = vmax.f32 %v2650, 0.0
      %v2658 = vmax.f32 %v2651, 0.0
      %v2659 = vmax.f32 %v2652, 0.0
      %v2660 = vmax.f32 %v2653, 0.0
      %v2662 = vlaneseq
      %v2663 = vshrl.u32 %v2662, 7
      %v2664 = vsub.s32 0, %v2663
      %v2665 = vrot.slane %v2618, %v2664
      %v2667 = vmul.f32 %v2654, %v2665
      %v2668 = vmul.f32 %v2655, %v2665
      %v2669 = vmul.f32 %v2656, %v2665
      %v2670 = vmul.f32 %v2657, %v2665
      %v2671 = vmul.f32 %v2658, %v2665
      %v2672 = vmul.f32 %v2659, %v2665
      %v2673 = vmul.f32 %v2660, %v2665
      %v2675 = vlaneseq
      %v2676 = vshrl.u32 %v2675, 7
      %v2677 = vsub.s32 0, %v2676
      %v2678 = vrot.slane %v2619, %v2677
      %v2680 = vadd.f32 %v2667, %v2678
      %v2681 = vadd.f32 %v2668, %v2678
      %v2682 = vadd.f32 %v2669, %v2678
      %v2683 = vadd.f32 %v2670, %v2678
      %v2684 = vadd.f32 %v2671, %v2678
      %v2685 = vadd.f32 %v2672, %v2678
      %v2686 = vadd.f32 %v2673, %v2678
      %vm2687 = vcmask 64512
      %2688 = vst.msk [vmem:[%s224] sm:$0xff] %vm2687, %v2680
      %2689 = vst.msk [vmem:[%s224 + $0x8] sm:$0xff] %vm2687, %v2681
      %2690 = vst.msk [vmem:[%s224 + $0x10] sm:$0xff] %vm2687, %v2682
      %2691 = vst.msk [vmem:[%s224 + $0x18] sm:$0xff] %vm2687, %v2683
      %2692 = vst.msk [vmem:[%s224 + $0x20] sm:$0xff] %vm2687, %v2684
      %2693 = vst.msk [vmem:[%s224 + $0x28] sm:$0xff] %vm2687, %v2685
      %2694 = vst.msk [vmem:[%s224 + $0x30] sm:$0xff] %vm2687, %v2686
      %p2695 = scmp.lt.s32.totalorder %s16, 1
      %s2696 = scalar_select %p2695, %s16, 1
      %s2697 = smul.addr %s2696, 7
      %s2698 = smul.addr %s2697, 8
      %s2699 = scalar_lea.vmem %s5, %s2698
      // Predicated region
      $region41: #{basic_conv2d.1} parent=39 // pred_check
        %p2700 = pneg %p144
      $region42: #{basic_conv2d.1} parent=39 // pred_check_branch
        %2702 = sbr.rel (%p2700) target = $region44
      $region43: #{basic_conv2d.1} parent=39 // pred_region
        _
      $region44: #{basic_conv2d.1} parent=39 // pred_fallthru
        _
    $region40: #{basic_conv2d.1} parent=5 // pred_fallthru
      _
    %p2703 = scmp.le.s32.totalorder 2, %s11
    // Predicated region
    $region45: #{basic_conv2d.1} parent=5 // pred_check
      %p2704 = pneg %p2703
    $region46: #{basic_conv2d.1} parent=5 // pred_check_branch
      %2706 = sbr.rel (%p2704) target = $region48
    $region47: #{basic_conv2d.1} parent=5 // pred_region
      %s2707 = ssub.s32 %s11, 2
      // Predicated region
      $region49: #{basic_conv2d.1} parent=47 // pred_check
        %p2708 = pneg %p150
      $region50: #{basic_conv2d.1} parent=47 // pred_check_branch
        %2710 = sbr.rel (%p2708) target = $region52
      $region51: #{basic_conv2d.1} parent=47 // pred_region
        %p2711 = scmp.lt.s32.totalorder %s17, 1
        %s2712 = scalar_select %p2711, %s17, 1
        %s2713 = smul.addr %s2712, 7
        %s2714 = smul.addr %s2713, 8
        %s2715 = scalar_lea.vmem %s5, %s2714
      $region52: #{basic_conv2d.1} parent=47 // pred_fallthru
        _
    $region48: #{basic_conv2d.1} parent=5 // pred_fallthru
      _
  $region6: #{basic_conv2d.1} parent=0 // loop_footer
    %s15 = sadd.s32 1, %s11
  $region7: #{basic_conv2d.1} parent=0 // loop_footer_branch
    %10 = sbr.rel target = $region3
  $region8: #{basic_conv2d.1} parent=0 // loop_exit
    _

</llo_original>
